<compile_context>
chip_gen: v5e
topology: v5e:2x2
jax: 0.10.0
libtpu: 0.0.40
codegen_flags: <defaults>
</compile_context>

<pallas_src>
import jax
import jax.numpy as jnp
from jax.experimental import pallas as pl
from jax.experimental.pallas import tpu as pltpu

_LANE = 128


def _round_up(n, m):
    return ((n + m - 1) // m) * m


def _sublane_multiple(dtype):
    # Sub-32-bit dtypes pack along sublanes: 8 rows (f32), 16 (bf16), 32 (int8/fp8).
    return {4: 8, 2: 16, 1: 32}.get(jnp.dtype(dtype).itemsize, 8)


def _vmem_capacity_bytes():
    try:
        return int(pltpu.get_tpu_info().vmem_capacity_bytes)
    except Exception:
        return 64 << 20  # conservative (v7x-sized) fallback


def dqn_kernel(x_ref, w1_ref, b1_ref, w2_ref, b2_ref,
               w3_ref, b3_ref, w4_ref, b4_ref, out_ref):
    # One batch tile through all four layers.  Matmuls accumulate in f32 on the MXU;
    # bias + ReLU run on the f32 accumulator (VPU epilogue stays f32 for v5e).
    x = x_ref[...]
    h = jnp.dot(x, w1_ref[...], preferred_element_type=jnp.float32)
    h = jnp.maximum(h + b1_ref[...], 0.0)
    h = jnp.dot(h.astype(w2_ref.dtype), w2_ref[...], preferred_element_type=jnp.float32)
    h = jnp.maximum(h + b2_ref[...], 0.0)
    h = jnp.dot(h.astype(w3_ref.dtype), w3_ref[...], preferred_element_type=jnp.float32)
    h = jnp.maximum(h + b3_ref[...], 0.0)
    q = jnp.dot(h.astype(w4_ref.dtype), w4_ref[...], preferred_element_type=jnp.float32)
    out_ref[...] = (q + b4_ref[...]).astype(out_ref.dtype)


def prepare_params(params, *, compute_dtype=jnp.bfloat16):
    """Pad feature dims to lane multiples (128) and cast weights ONCE, outside the hot path.

    Weights are stored [in, out] (transposed vs nn.Linear) so y = x @ W + b.
    Zero padding is exact through Linear+ReLU.  Biases stay f32 (f32 epilogue).
    """
    w1, b1, w2, b2, w3, b3, w4, b4 = params
    state_dim, hidden_dim = w1.shape
    action_dim = w4.shape[1]
    hid_p = _round_up(hidden_dim, _LANE)
    act_p = _round_up(action_dim, _LANE)

    wd = jnp.dtype(w1.dtype if compute_dtype is None else compute_dtype)
    # If the requested dtype's resident weights would not fit comfortably in this
    # generation's VMEM, fall back to bf16 rather than spill / fail to compile.
    resident_bytes = (state_dim * hid_p + 2 * hid_p * hid_p + hid_p * act_p) * wd.itemsize
    if wd.itemsize > 2 and resident_bytes > int(0.7 * _vmem_capacity_bytes()):
        wd = jnp.dtype(jnp.bfloat16)
    # TODO(synk): for hidden dims where even bf16 weights exceed VMEM, stream w2/w3 from HBM
    # (memory_space=pl.ANY + pltpu.emit_pipeline over a K-tile axis) instead of forcing residency.

    def padw(a, rows, cols):
        return jnp.pad(a, ((0, rows - a.shape[0]), (0, cols - a.shape[1]))).astype(wd)

    def padb(a, cols):
        a = jnp.asarray(a, jnp.float32).reshape(1, -1)
        return jnp.pad(a, ((0, 0), (0, cols - a.shape[1])))

    padded = (padw(w1, state_dim, hid_p), padb(b1, hid_p),
              padw(w2, hid_p, hid_p), padb(b2, hid_p),
              padw(w3, hid_p, hid_p), padb(b3, hid_p),
              padw(w4, hid_p, act_p), padb(b4, act_p))
    meta = dict(state_dim=state_dim, hidden_dim=hidden_dim, action_dim=action_dim,
                hid_p=hid_p, act_p=act_p, compute_dtype=wd)
    return padded, meta


def dqn_forward_padded(x, padded_params, meta, *, batch_tile=512):
    """Hot-path forward.  Returns the lane-padded [batch_p, act_p] f32 Q-values
    (consumer slices lazily; avoids a second full HBM pass over the output)."""
    w1p, b1p, w2p, b2p, w3p, b3p, w4p, b4p = padded_params
    batch, state_dim = x.shape
    assert state_dim == meta["state_dim"]
    hid_p, act_p = meta["hid_p"], meta["act_p"]
    cdt = meta["compute_dtype"]

    # Batch tile: dtype-aware sublane multiple, no larger than the (padded) batch.
    sub = _sublane_multiple(cdt)
    tb = max(sub, min(_round_up(batch, sub), _round_up(batch_tile, sub)))
    batch_p = _round_up(batch, tb)

    xp = x.astype(cdt) if x.dtype != cdt else x
    if batch_p != batch:
        xp = jnp.pad(xp, ((0, batch_p - batch), (0, 0)))

    grid = (batch_p // tb,)
    resident = lambda i: (0, 0)  # constant block index -> stays in VMEM across steps
    cap = _vmem_capacity_bytes()
    w_bytes = sum(int(a.size) * a.dtype.itemsize for a in (w1p, w2p, w3p, w4p))
    b_bytes = sum(int(a.size) * a.dtype.itemsize for a in (b1p, b2p, b3p, b4p))
    state_lanes = _round_up(state_dim, _LANE)               # x tile is lane-padded in VMEM
    tile_bytes = tb * state_lanes * xp.dtype.itemsize + tb * act_p * 4
    scratch_bytes = 6 * tb * hid_p * 4                      # f32 intermediates

    def run(single_buffer):
        w_mult = 1 if single_buffer else 2
        needed = (w_mult * (w_bytes + b_bytes) + 2 * tile_bytes + scratch_bytes + (4 << 20))
        vmem_limit = int(min(max(needed, 16 << 20), cap - (8 << 20)))

        def wspec(shape):
            if single_buffer:
                return pl.BlockSpec(shape, resident, pipeline_mode=pl.Buffered(1))
            return pl.BlockSpec(shape, resident)

        return pl.pallas_call(
            dqn_kernel,
            out_shape=jax.ShapeDtypeStruct((batch_p, act_p), jnp.float32),
            grid=grid,
            in_specs=[
                pl.BlockSpec((tb, state_dim), lambda i: (i, 0)),  # x: tiled over batch
                wspec((state_dim, hid_p)),  # w1
                wspec((1, hid_p)),          # b1
                wspec((hid_p, hid_p)),      # w2
                wspec((1, hid_p)),          # b2
                wspec((hid_p, hid_p)),      # w3
                wspec((1, hid_p)),          # b3
                wspec((hid_p, act_p)),      # w4
                wspec((1, act_p)),          # b4
            ],
            out_specs=pl.BlockSpec((tb, act_p), lambda i: (i, 0)),
            compiler_params=pltpu.CompilerParams(
                # "parallel" enables megacore sharding of the batch axis on v7x;
                # (CORE_PARALLEL / core_map is the explicit per-core alternative).
                dimension_semantics=("parallel",),
                vmem_limit_bytes=vmem_limit,
            ),
        )(xp, w1p, b1p, w2p, b2p, w3p, b3p, w4p, b4p)

    try:
        return run(single_buffer=True)
    except Exception:
        # Robustness fallback: default double-buffered resident blocks.
        return run(single_buffer=False)


def dqn_forward(x, params, *, batch_tile=512, compute_dtype=jnp.bfloat16):
    """Convenience wrapper matching the nn.Module API: pads params per call and slices the
    output.  An actor loop should call prepare_params() once and dqn_forward_padded()."""
    padded, meta = prepare_params(params, compute_dtype=compute_dtype)
    out = dqn_forward_padded(x, padded, meta, batch_tile=batch_tile)
    return out[:x.shape[0], :meta["action_dim"]]


def init_linear(key, fan_in, fan_out):
    # Mimics PyTorch nn.Linear default init: uniform(-1/sqrt(fan_in), 1/sqrt(fan_in)).
    kw, kb = jax.random.split(key)
    bound = 1.0 / jnp.sqrt(jnp.float32(fan_in))
    w = jax.random.uniform(kw, (fan_in, fan_out), jnp.float32, -bound, bound)
    b = jax.random.uniform(kb, (1, fan_out), jnp.float32, -bound, bound)
    return w, b


def make_params(key, state_dim, action_dim, hidden_dim):
    k1, k2, k3, k4 = jax.random.split(key, 4)
    w1, b1 = init_linear(k1, state_dim, hidden_dim)
    w2, b2 = init_linear(k2, hidden_dim, hidden_dim)
    w3, b3 = init_linear(k3, hidden_dim, hidden_dim)
    w4, b4 = init_linear(k4, hidden_dim, action_dim)
    return (w1, b1, w2, b2, w3, b3, w4, b4)


def reference_forward(x, params):
    (w1, b1, w2, b2, w3, b3, w4, b4) = params
    h = jnp.maximum(x @ w1 + b1, 0.0)
    h = jnp.maximum(h @ w2 + b2, 0.0)
    h = jnp.maximum(h @ w3 + b3, 0.0)
    return h @ w4 + b4


if __name__ == "__main__":
    batch, state_dim, action_dim, hidden_dim = 24, 8, 4, 32
    key = jax.random.PRNGKey(0)
    kx, kp = jax.random.split(key)
    x = jax.random.normal(kx, (batch, state_dim), jnp.float32)
    params = make_params(kp, state_dim, action_dim, hidden_dim)
    ref = reference_forward(x, params)

    # f32 path; small batch_tile exercises a 3-step pipelined grid at this toy size.
    out_f32 = dqn_forward(x, params, batch_tile=8, compute_dtype=None)
    jax.block_until_ready(out_f32)
    assert out_f32.shape == (batch, action_dim)
    err32 = float(jnp.max(jnp.abs(out_f32 - ref)))
    assert jnp.allclose(out_f32, ref, atol=1e-2, rtol=1e-2), err32

    # Production default: bf16 x/weights on the MXU, f32 accumulation + epilogue.
    # (also exercises batch padding: 24 rows -> 32-row bf16 tile)
    out_bf16 = dqn_forward(x, params)
    jax.block_until_ready(out_bf16)
    assert out_bf16.shape == (batch, action_dim)
    err16 = float(jnp.max(jnp.abs(out_bf16 - ref)))
    assert jnp.allclose(out_bf16, ref, atol=5e-2, rtol=5e-2), err16

    print("KERNEL_OK")
</pallas_src>

<mosaic_0001>
module attributes {stable_mosaic.version = 11 : i64} {
  func.func @dqn_kernel(%arg0: i32, %arg1: memref<8x8xf32, #tpu.memory_space<vmem>>, %arg2: memref<8x128xf32, #tpu.memory_space<vmem>>, %arg3: memref<1x128xf32, #tpu.memory_space<vmem>>, %arg4: memref<128x128xf32, #tpu.memory_space<vmem>>, %arg5: memref<1x128xf32, #tpu.memory_space<vmem>>, %arg6: memref<128x128xf32, #tpu.memory_space<vmem>>, %arg7: memref<1x128xf32, #tpu.memory_space<vmem>>, %arg8: memref<128x128xf32, #tpu.memory_space<vmem>>, %arg9: memref<1x128xf32, #tpu.memory_space<vmem>>, %arg10: memref<8x128xf32, #tpu.memory_space<vmem>>) attributes {dimension_semantics = [#tpu.dimension_semantics<parallel>], iteration_bounds = array<i64: 3>, scalar_prefetch = 0 : i64, scratch_operands = 0 : i64, tpu.core_type = #tpu.core_type<tc>, window_params = [{transform_indices = @transform_0, window_bounds = array<i64: 8, 8>}, {pipeline_mode = #tpu.pipeline_mode<synchronous>, transform_indices = @transform_1, window_bounds = array<i64: 8, 128>}, {pipeline_mode = #tpu.pipeline_mode<synchronous>, transform_indices = @transform_2, window_bounds = array<i64: 1, 128>}, {pipeline_mode = #tpu.pipeline_mode<synchronous>, transform_indices = @transform_3, window_bounds = array<i64: 128, 128>}, {pipeline_mode = #tpu.pipeline_mode<synchronous>, transform_indices = @transform_4, window_bounds = array<i64: 1, 128>}, {pipeline_mode = #tpu.pipeline_mode<synchronous>, transform_indices = @transform_5, window_bounds = array<i64: 128, 128>}, {pipeline_mode = #tpu.pipeline_mode<synchronous>, transform_indices = @transform_6, window_bounds = array<i64: 1, 128>}, {pipeline_mode = #tpu.pipeline_mode<synchronous>, transform_indices = @transform_7, window_bounds = array<i64: 128, 128>}, {pipeline_mode = #tpu.pipeline_mode<synchronous>, transform_indices = @transform_8, window_bounds = array<i64: 1, 128>}, {transform_indices = @transform_9, window_bounds = array<i64: 8, 128>}]} {
    %c0 = arith.constant 0 : index
    %c0_0 = arith.constant 0 : index
    %0 = vector.load %arg1[%c0, %c0_0] : memref<8x8xf32, #tpu.memory_space<vmem>>, vector<8x8xf32>
    %c0_1 = arith.constant 0 : index
    %c0_2 = arith.constant 0 : index
    %1 = vector.load %arg2[%c0_1, %c0_2] : memref<8x128xf32, #tpu.memory_space<vmem>>, vector<8x128xf32>
    %cst = arith.constant dense<0.000000e+00> : vector<8x128xf32>
    %2 = tpu.matmul %0, %1, %cst {dimension_numbers = #tpu.dot_dimension_numbers<[1], [0], [0], [1], [0, 0, 1, 1], [], []>} : vector<8x8xf32>, vector<8x128xf32>, vector<8x128xf32> -> vector<8x128xf32>
    %c0_3 = arith.constant 0 : index
    %c0_4 = arith.constant 0 : index
    %3 = vector.load %arg3[%c0_3, %c0_4] : memref<1x128xf32, #tpu.memory_space<vmem>>, vector<1x128xf32>
    %4 = vector.broadcast %3 : vector<1x128xf32> to vector<8x128xf32>
    %5 = arith.addf %2, %4 : vector<8x128xf32>
    %cst_5 = arith.constant 0.000000e+00 : f32
    %6 = vector.broadcast %cst_5 : f32 to vector<8x128xf32>
    %7 = arith.maximumf %5, %6 : vector<8x128xf32>
    %c0_6 = arith.constant 0 : index
    %c0_7 = arith.constant 0 : index
    %8 = vector.load %arg4[%c0_6, %c0_7] : memref<128x128xf32, #tpu.memory_space<vmem>>, vector<128x128xf32>
    %cst_8 = arith.constant dense<0.000000e+00> : vector<8x128xf32>
    %9 = tpu.matmul %7, %8, %cst_8 {dimension_numbers = #tpu.dot_dimension_numbers<[1], [0], [0], [1], [0, 0, 1, 1], [], []>} : vector<8x128xf32>, vector<128x128xf32>, vector<8x128xf32> -> vector<8x128xf32>
    %c0_9 = arith.constant 0 : index
    %c0_10 = arith.constant 0 : index
    %10 = vector.load %arg5[%c0_9, %c0_10] : memref<1x128xf32, #tpu.memory_space<vmem>>, vector<1x128xf32>
    %11 = vector.broadcast %10 : vector<1x128xf32> to vector<8x128xf32>
    %12 = arith.addf %9, %11 : vector<8x128xf32>
    %cst_11 = arith.constant 0.000000e+00 : f32
    %13 = vector.broadcast %cst_11 : f32 to vector<8x128xf32>
    %14 = arith.maximumf %12, %13 : vector<8x128xf32>
    %c0_12 = arith.constant 0 : index
    %c0_13 = arith.constant 0 : index
    %15 = vector.load %arg6[%c0_12, %c0_13] : memref<128x128xf32, #tpu.memory_space<vmem>>, vector<128x128xf32>
    %cst_14 = arith.constant dense<0.000000e+00> : vector<8x128xf32>
    %16 = tpu.matmul %14, %15, %cst_14 {dimension_numbers = #tpu.dot_dimension_numbers<[1], [0], [0], [1], [0, 0, 1, 1], [], []>} : vector<8x128xf32>, vector<128x128xf32>, vector<8x128xf32> -> vector<8x128xf32>
    %c0_15 = arith.constant 0 : index
    %c0_16 = arith.constant 0 : index
    %17 = vector.load %arg7[%c0_15, %c0_16] : memref<1x128xf32, #tpu.memory_space<vmem>>, vector<1x128xf32>
    %18 = vector.broadcast %17 : vector<1x128xf32> to vector<8x128xf32>
    %19 = arith.addf %16, %18 : vector<8x128xf32>
    %cst_17 = arith.constant 0.000000e+00 : f32
    %20 = vector.broadcast %cst_17 : f32 to vector<8x128xf32>
    %21 = arith.maximumf %19, %20 : vector<8x128xf32>
    %c0_18 = arith.constant 0 : index
    %c0_19 = arith.constant 0 : index
    %22 = vector.load %arg8[%c0_18, %c0_19] : memref<128x128xf32, #tpu.memory_space<vmem>>, vector<128x128xf32>
    %cst_20 = arith.constant dense<0.000000e+00> : vector<8x128xf32>
    %23 = tpu.matmul %21, %22, %cst_20 {dimension_numbers = #tpu.dot_dimension_numbers<[1], [0], [0], [1], [0, 0, 1, 1], [], []>} : vector<8x128xf32>, vector<128x128xf32>, vector<8x128xf32> -> vector<8x128xf32>
    %c0_21 = arith.constant 0 : index
    %c0_22 = arith.constant 0 : index
    %24 = vector.load %arg9[%c0_21, %c0_22] : memref<1x128xf32, #tpu.memory_space<vmem>>, vector<1x128xf32>
    %25 = vector.broadcast %24 : vector<1x128xf32> to vector<8x128xf32>
    %26 = arith.addf %23, %25 : vector<8x128xf32>
    %c0_23 = arith.constant 0 : index
    %c0_24 = arith.constant 0 : index
    %27 = vector.load %arg10[%c0_23, %c0_24] : memref<8x128xf32, #tpu.memory_space<vmem>>, vector<8x128xf32>
    tpu.vector_store %arg10[%c0_23, %c0_24], %26 {strides = array<i32>} : memref<8x128xf32, #tpu.memory_space<vmem>>, vector<8x128xf32>,
    return
  }
  func.func @transform_0(%arg0: i32) -> (i32, i32) {
    %c0_i32 = arith.constant 0 : i32
    %c0_i32_0 = arith.constant 0 : i32
    return %arg0, %c0_i32 : i32, i32
  }
  func.func @transform_1(%arg0: i32) -> (i32, i32) {
    %c0_i32 = arith.constant 0 : i32
    %c0_i32_0 = arith.constant 0 : i32
    %c0_i32_1 = arith.constant 0 : i32
    return %c0_i32, %c0_i32_0 : i32, i32
  }
  func.func @transform_2(%arg0: i32) -> (i32, i32) {
    %c0_i32 = arith.constant 0 : i32
    %c0_i32_0 = arith.constant 0 : i32
    %c0_i32_1 = arith.constant 0 : i32
    return %c0_i32, %c0_i32_0 : i32, i32
  }
  func.func @transform_3(%arg0: i32) -> (i32, i32) {
    %c0_i32 = arith.constant 0 : i32
    %c0_i32_0 = arith.constant 0 : i32
    %c0_i32_1 = arith.constant 0 : i32
    return %c0_i32, %c0_i32_0 : i32, i32
  }
  func.func @transform_4(%arg0: i32) -> (i32, i32) {
    %c0_i32 = arith.constant 0 : i32
    %c0_i32_0 = arith.constant 0 : i32
    %c0_i32_1 = arith.constant 0 : i32
    return %c0_i32, %c0_i32_0 : i32, i32
  }
  func.func @transform_5(%arg0: i32) -> (i32, i32) {
    %c0_i32 = arith.constant 0 : i32
    %c0_i32_0 = arith.constant 0 : i32
    %c0_i32_1 = arith.constant 0 : i32
    return %c0_i32, %c0_i32_0 : i32, i32
  }
  func.func @transform_6(%arg0: i32) -> (i32, i32) {
    %c0_i32 = arith.constant 0 : i32
    %c0_i32_0 = arith.constant 0 : i32
    %c0_i32_1 = arith.constant 0 : i32
    return %c0_i32, %c0_i32_0 : i32, i32
  }
  func.func @transform_7(%arg0: i32) -> (i32, i32) {
    %c0_i32 = arith.constant 0 : i32
    %c0_i32_0 = arith.constant 0 : i32
    %c0_i32_1 = arith.constant 0 : i32
    return %c0_i32, %c0_i32_0 : i32, i32
  }
  func.func @transform_8(%arg0: i32) -> (i32, i32) {
    %c0_i32 = arith.constant 0 : i32
    %c0_i32_0 = arith.constant 0 : i32
    %c0_i32_1 = arith.constant 0 : i32
    return %c0_i32, %c0_i32_0 : i32, i32
  }
  func.func @transform_9(%arg0: i32) -> (i32, i32) {
    %c0_i32 = arith.constant 0 : i32
    %c0_i32_0 = arith.constant 0 : i32
    return %arg0, %c0_i32 : i32, i32
  }
}

module attributes {stable_mosaic.version = 11 : i64} {
  func.func @dqn_kernel(%arg0: i32, %arg1: memref<8x8xf32, #tpu.memory_space<vmem>>, %arg2: memref<8x128xf32, #tpu.memory_space<vmem>>, %arg3: memref<1x128xf32, #tpu.memory_space<vmem>>, %arg4: memref<128x128xf32, #tpu.memory_space<vmem>>, %arg5: memref<1x128xf32, #tpu.memory_space<vmem>>, %arg6: memref<128x128xf32, #tpu.memory_space<vmem>>, %arg7: memref<1x128xf32, #tpu.memory_space<vmem>>, %arg8: memref<128x128xf32, #tpu.memory_space<vmem>>, %arg9: memref<1x128xf32, #tpu.memory_space<vmem>>, %arg10: memref<8x128xf32, #tpu.memory_space<vmem>>) attributes {dimension_semantics = [#tpu.dimension_semantics<parallel>], iteration_bounds = array<i64: 3>, scalar_prefetch = 0 : i64, scratch_operands = 0 : i64, tpu.core_type = #tpu.core_type<tc>, window_params = [{transform_indices = @transform_0, window_bounds = array<i64: 8, 8>}, {pipeline_mode = #tpu.pipeline_mode<synchronous>, transform_indices = @transform_1, window_bounds = array<i64: 8, 128>}, {pipeline_mode = #tpu.pipeline_mode<synchronous>, transform_indices = @transform_2, window_bounds = array<i64: 1, 128>}, {pipeline_mode = #tpu.pipeline_mode<synchronous>, transform_indices = @transform_3, window_bounds = array<i64: 128, 128>}, {pipeline_mode = #tpu.pipeline_mode<synchronous>, transform_indices = @transform_4, window_bounds = array<i64: 1, 128>}, {pipeline_mode = #tpu.pipeline_mode<synchronous>, transform_indices = @transform_5, window_bounds = array<i64: 128, 128>}, {pipeline_mode = #tpu.pipeline_mode<synchronous>, transform_indices = @transform_6, window_bounds = array<i64: 1, 128>}, {pipeline_mode = #tpu.pipeline_mode<synchronous>, transform_indices = @transform_7, window_bounds = array<i64: 128, 128>}, {pipeline_mode = #tpu.pipeline_mode<synchronous>, transform_indices = @transform_8, window_bounds = array<i64: 1, 128>}, {transform_indices = @transform_9, window_bounds = array<i64: 8, 128>}]} {
    %c0 = arith.constant 0 : index
    %c0_0 = arith.constant 0 : index
    %0 = vector.load %arg1[%c0, %c0_0] : memref<8x8xf32, #tpu.memory_space<vmem>>, vector<8x8xf32>
    %c0_1 = arith.constant 0 : index
    %c0_2 = arith.constant 0 : index
    %1 = vector.load %arg2[%c0_1, %c0_2] : memref<8x128xf32, #tpu.memory_space<vmem>>, vector<8x128xf32>
    %cst = arith.constant dense<0.000000e+00> : vector<8x128xf32>
    %2 = tpu.matmul %0, %1, %cst {dimension_numbers = #tpu.dot_dimension_numbers<[1], [0], [0], [1], [0, 0, 1, 1], [], []>} : vector<8x8xf32>, vector<8x128xf32>, vector<8x128xf32> -> vector<8x128xf32>
    %c0_3 = arith.constant 0 : index
    %c0_4 = arith.constant 0 : index
    %3 = vector.load %arg3[%c0_3, %c0_4] : memref<1x128xf32, #tpu.memory_space<vmem>>, vector<1x128xf32>
    %4 = vector.broadcast %3 : vector<1x128xf32> to vector<8x128xf32>
    %5 = arith.addf %2, %4 : vector<8x128xf32>
    %cst_5 = arith.constant 0.000000e+00 : f32
    %6 = vector.broadcast %cst_5 : f32 to vector<8x128xf32>
    %7 = arith.maximumf %5, %6 : vector<8x128xf32>
    %c0_6 = arith.constant 0 : index
    %c0_7 = arith.constant 0 : index
    %8 = vector.load %arg4[%c0_6, %c0_7] : memref<128x128xf32, #tpu.memory_space<vmem>>, vector<128x128xf32>
    %cst_8 = arith.constant dense<0.000000e+00> : vector<8x128xf32>
    %9 = tpu.matmul %7, %8, %cst_8 {dimension_numbers = #tpu.dot_dimension_numbers<[1], [0], [0], [1], [0, 0, 1, 1], [], []>} : vector<8x128xf32>, vector<128x128xf32>, vector<8x128xf32> -> vector<8x128xf32>
    %c0_9 = arith.constant 0 : index
    %c0_10 = arith.constant 0 : index
    %10 = vector.load %arg5[%c0_9, %c0_10] : memref<1x128xf32, #tpu.memory_space<vmem>>, vector<1x128xf32>
    %11 = vector.broadcast %10 : vector<1x128xf32> to vector<8x128xf32>
    %12 = arith.addf %9, %11 : vector<8x128xf32>
    %cst_11 = arith.constant 0.000000e+00 : f32
    %13 = vector.broadcast %cst_11 : f32 to vector<8x128xf32>
    %14 = arith.maximumf %12, %13 : vector<8x128xf32>
    %c0_12 = arith.constant 0 : index
    %c0_13 = arith.constant 0 : index
    %15 = vector.load %arg6[%c0_12, %c0_13] : memref<128x128xf32, #tpu.memory_space<vmem>>, vector<128x128xf32>
    %cst_14 = arith.constant dense<0.000000e+00> : vector<8x128xf32>
    %16 = tpu.matmul %14, %15, %cst_14 {dimension_numbers = #tpu.dot_dimension_numbers<[1], [0], [0], [1], [0, 0, 1, 1], [], []>} : vector<8x128xf32>, vector<128x128xf32>, vector<8x128xf32> -> vector<8x128xf32>
    %c0_15 = arith.constant 0 : index
    %c0_16 = arith.constant 0 : index
    %17 = vector.load %arg7[%c0_15, %c0_16] : memref<1x128xf32, #tpu.memory_space<vmem>>, vector<1x128xf32>
    %18 = vector.broadcast %17 : vector<1x128xf32> to vector<8x128xf32>
    %19 = arith.addf %16, %18 : vector<8x128xf32>
    %cst_17 = arith.constant 0.000000e+00 : f32
    %20 = vector.broadcast %cst_17 : f32 to vector<8x128xf32>
    %21 = arith.maximumf %19, %20 : vector<8x128xf32>
    %c0_18 = arith.constant 0 : index
    %c0_19 = arith.constant 0 : index
    %22 = vector.load %arg8[%c0_18, %c0_19] : memref<128x128xf32, #tpu.memory_space<vmem>>, vector<128x128xf32>
    %cst_20 = arith.constant dense<0.000000e+00> : vector<8x128xf32>
    %23 = tpu.matmul %21, %22, %cst_20 {dimension_numbers = #tpu.dot_dimension_numbers<[1], [0], [0], [1], [0, 0, 1, 1], [], []>} : vector<8x128xf32>, vector<128x128xf32>, vector<8x128xf32> -> vector<8x128xf32>
    %c0_21 = arith.constant 0 : index
    %c0_22 = arith.constant 0 : index
    %24 = vector.load %arg9[%c0_21, %c0_22] : memref<1x128xf32, #tpu.memory_space<vmem>>, vector<1x128xf32>
    %25 = vector.broadcast %24 : vector<1x128xf32> to vector<8x128xf32>
    %26 = arith.addf %23, %25 : vector<8x128xf32>
    %c0_23 = arith.constant 0 : index
    %c0_24 = arith.constant 0 : index
    %27 = vector.load %arg10[%c0_23, %c0_24] : memref<8x128xf32, #tpu.memory_space<vmem>>, vector<8x128xf32>
    tpu.vector_store %arg10[%c0_23, %c0_24], %26 {strides = array<i32>} : memref<8x128xf32, #tpu.memory_space<vmem>>, vector<8x128xf32>,
    return
  }
  func.func @transform_0(%arg0: i32) -> (i32, i32) {
    %c0_i32 = arith.constant 0 : i32
    %c0_i32_0 = arith.constant 0 : i32
    return %arg0, %c0_i32 : i32, i32
  }
  func.func @transform_1(%arg0: i32) -> (i32, i32) {
    %c0_i32 = arith.constant 0 : i32
    %c0_i32_0 = arith.constant 0 : i32
    %c0_i32_1 = arith.constant 0 : i32
    return %c0_i32, %c0_i32_0 : i32, i32
  }
  func.func @transform_2(%arg0: i32) -> (i32, i32) {
    %c0_i32 = arith.constant 0 : i32
    %c0_i32_0 = arith.constant 0 : i32
    %c0_i32_1 = arith.constant 0 : i32
    return %c0_i32, %c0_i32_0 : i32, i32
  }
  func.func @transform_3(%arg0: i32) -> (i32, i32) {
    %c0_i32 = arith.constant 0 : i32
    %c0_i32_0 = arith.constant 0 : i32
    %c0_i32_1 = arith.constant 0 : i32
    return %c0_i32, %c0_i32_0 : i32, i32
  }
  func.func @transform_4(%arg0: i32) -> (i32, i32) {
    %c0_i32 = arith.constant 0 : i32
    %c0_i32_0 = arith.constant 0 : i32
    %c0_i32_1 = arith.constant 0 : i32
    return %c0_i32, %c0_i32_0 : i32, i32
  }
  func.func @transform_5(%arg0: i32) -> (i32, i32) {
    %c0_i32 = arith.constant 0 : i32
    %c0_i32_0 = arith.constant 0 : i32
    %c0_i32_1 = arith.constant 0 : i32
    return %c0_i32, %c0_i32_0 : i32, i32
  }
  func.func @transform_6(%arg0: i32) -> (i32, i32) {
    %c0_i32 = arith.constant 0 : i32
    %c0_i32_0 = arith.constant 0 : i32
    %c0_i32_1 = arith.constant 0 : i32
    return %c0_i32, %c0_i32_0 : i32, i32
  }
  func.func @transform_7(%arg0: i32) -> (i32, i32) {
    %c0_i32 = arith.constant 0 : i32
    %c0_i32_0 = arith.constant 0 : i32
    %c0_i32_1 = arith.constant 0 : i32
    return %c0_i32, %c0_i32_0 : i32, i32
  }
  func.func @transform_8(%arg0: i32) -> (i32, i32) {
    %c0_i32 = arith.constant 0 : i32
    %c0_i32_0 = arith.constant 0 : i32
    %c0_i32_1 = arith.constant 0 : i32
    return %c0_i32, %c0_i32_0 : i32, i32
  }
  func.func @transform_9(%arg0: i32) -> (i32, i32) {
    %c0_i32 = arith.constant 0 : i32
    %c0_i32_0 = arith.constant 0 : i32
    return %arg0, %c0_i32 : i32, i32
  }
}

</mosaic_0001>

<llo_original>
// kernel: tpu_custom_call.1
$region0: #{tpu_custom_call.1}
  #allocation0 [shape = 'u32[]', space=smem, size = 0x4, offset = 0x4, fixed_abs, tag = 'smem constant byte address 0x4 - core index']
  #allocation1 [shape = 'u32[72,128]{1,0:T(1,128)}', space=vmem, size = 0x9000, scoped, tag = 'internal scratch']
  %s0 = inlined_call_operand.vmem [shape: f32[24,8], index: 0, kind: input, shape index: {}]
  %s1 = inlined_call_operand.vmem [shape: f32[8,128], index: 1, kind: input, shape index: {}]
  %s2 = inlined_call_operand.vmem [shape: f32[1,128], index: 2, kind: input, shape index: {}]
  %s3 = inlined_call_operand.hbm [shape: f32[128,128], index: 3, kind: input, shape index: {}]
  %s4 = inlined_call_operand.vmem [shape: f32[1,128], index: 4, kind: input, shape index: {}]
  %s5 = inlined_call_operand.hbm [shape: f32[128,128], index: 5, kind: input, shape index: {}]
  %s6 = inlined_call_operand.vmem [shape: f32[1,128], index: 6, kind: input, shape index: {}]
  %s7 = inlined_call_operand.hbm [shape: f32[128,128], index: 7, kind: input, shape index: {}]
  %s8 = inlined_call_operand.vmem [shape: f32[1,128], index: 8, kind: input, shape index: {}]
  %s9 = inlined_call_operand.hbm [shape: f32[24,128], index: 9, kind: output, shape index: {}]
  %s10 = sld [smem:[#allocation0]]
  $region81: #{tpu_custom_call.1} parent=0
    _
  %s12 = ssub.s32 1, %s10
  %s13 = scalar_select 0, %s12, %s10
  $region1: #{tpu_custom_call.1} parent=0
    #allocation2 [shape = 'u8[65536]{0}', space=vmem, size = 0x10000, scoped, tag = 'input window, operand 3, single buffered']
    #allocation3 [shape = 's32[2]{0}', space=sflag, size = 0x8, scoped, tag = 'scoped memory for tpu_custom_call.1']
    #allocation4 [shape = 's32[2]{0}', space=sflag, size = 0x8, scoped, tag = 'scoped memory for tpu_custom_call.1']
    #allocation5 [shape = 'u8[65536]{0}', space=vmem, size = 0x10000, scoped, tag = 'input window, operand 5, single buffered']
    #allocation6 [shape = 's32[1]{0}', space=sflag, size = 0x4, scoped, tag = 'scoped memory for tpu_custom_call.1']
    #allocation7 [shape = 'u8[65536]{0}', space=vmem, size = 0x10000, scoped, tag = 'input window, operand 7, single buffered']
    #allocation8 [shape = 'u8[8192]{0}', space=vmem, size = 0x2000, scoped, tag = 'output window, operand 0']
    %14 = vsyncpa [#allocation3], 0
    %15 = vsyncpa [#allocation6], 0
    %16 = vsyncpa [#allocation4], 0
    %s17 = scalar_lea.sflag [#allocation4], 1
    %18 = vsyncpa %s17, 0
    loop: start=0, step=1, limit=5
    $region2: #{tpu_custom_call.1} parent=1 // loop_pre_header
      _
    $region3: #{tpu_custom_call.1} parent=1 // loop_header
      %s20 = sphi 0, %s24
      %p21 = scmp.ge.s32.totalorder %s20, 5
      %s30 = sphi 0, %s32
      %s33 = sphi 0, %s30
      %s34 = sphi 0, %s33
      %s50 = sphi 0, %s34
      %s54 = sphi 0, %s54
      %s56 = sphi 0, %s54
      %s57 = sphi 0, %s56
      %s71 = sphi 0, %s57
      %s75 = sphi 0, %s75
      %s77 = sphi 0, %s75
      %s78 = sphi 0, %s77
      %s92 = sphi 0, %s78
      %s96 = sphi 0, %s96
      %s98 = sphi 0, %s96
      %s99 = sphi 0, %s98
      %s113 = sphi 0, %s99
      %s117 = sphi 0, %s117
      %s119 = sphi 0, %s117
      %s120 = sphi 0, %s119
      %s134 = sphi 0, %s120
      %s138 = sphi 0, %s138
      %s140 = sphi 0, %s138
      %s141 = sphi 0, %s140
      %s155 = sphi 0, %s141
      %s159 = sphi 0, %s159
      %s161 = sphi 0, %s159
      %s162 = sphi 0, %s161
      %s176 = sphi 0, %s162
      %s180 = sphi 0, %s180
      %s182 = sphi 0, %s180
      %s183 = sphi 0, %s182
      %s197 = sphi 0, %s183
      %s201 = sphi 0, %s201
      %s203 = sphi 0, %s201
      %s204 = sphi 0, %s203
      %s218 = sphi 0, %s204
      %s224 = sphi 0, %s226
      %s227 = sphi 0, %s224
      %s228 = sphi 0, %s227
      %s244 = sphi 0, %s228
    $region4: #{tpu_custom_call.1} parent=1 // loop_header_branch
      %23 = sbr.rel (%p21) target = $region8
    $region5: #{tpu_custom_call.1} parent=1 // loop_body
      %s25 = ssub.s32 %s20, 1
      %s26 = ssub.s32 %s20, 2
      %s27 = sadd.s32 %s20, 1
      %s28 = ssub.s32 %s20, %s27
      %p29 = scmp.eq.s32.totalorder %s28, 0
      %s31 = sadd.s32 %s30, 1
      %s32 = scalar_select %p29, %s30, %s31
      %p35 = pneg %p29
      %p36 = scmp.eq.s32.totalorder %s20, 2
      %p37 = por %p35, %p36
      %p38 = scmp.ne.s32.totalorder %s30, %s33
      %p39 = scmp.eq.s32.totalorder %s20, 0
      %p40 = por %p38, %p39
      %p41 = scmp.ne.s32.totalorder %s30, %s33
      %p42 = scmp.eq.s32.totalorder %s25, 2
      %p43 = por %p41, %p42
      %p44 = scmp.ne.s32.totalorder %s33, %s34
      %p45 = scmp.eq.s32.totalorder %s25, 0
      %p46 = por %p44, %p45
      %p47 = scmp.ne.s32.totalorder %s33, %s34
      %p48 = scmp.eq.s32.totalorder %s26, 2
      %p49 = por %p47, %p48
      %p51 = scmp.ne.s32.totalorder %s34, %s50
      %p52 = scmp.eq.s32.totalorder %s26, 0
      %p53 = por %p51, %p52
      %s55 = sadd.s32 %s54, 1
      %p58 = scmp.eq.s32.totalorder %s20, 2
      %p59 = scmp.ne.s32.totalorder %s54, %s56
      %p60 = scmp.eq.s32.totalorder %s20, 0
      %p61 = por %p59, %p60
      %p62 = scmp.ne.s32.totalorder %s54, %s56
      %p63 = scmp.eq.s32.totalorder %s25, 2
      %p64 = por %p62, %p63
      %p65 = scmp.ne.s32.totalorder %s56, %s57
      %p66 = scmp.eq.s32.totalorder %s25, 0
      %p67 = por %p65, %p66
      %p68 = scmp.ne.s32.totalorder %s56, %s57
      %p69 = scmp.eq.s32.totalorder %s26, 2
      %p70 = por %p68, %p69
      %p72 = scmp.ne.s32.totalorder %s57, %s71
      %p73 = scmp.eq.s32.totalorder %s26, 0
      %p74 = por %p72, %p73
      %s76 = sadd.s32 %s75, 1
      %p79 = scmp.eq.s32.totalorder %s20, 2
      %p80 = scmp.ne.s32.totalorder %s75, %s77
      %p81 = scmp.eq.s32.totalorder %s20, 0
      %p82 = por %p80, %p81
      %p83 = scmp.ne.s32.totalorder %s75, %s77
      %p84 = scmp.eq.s32.totalorder %s25, 2
      %p85 = por %p83, %p84
      %p86 = scmp.ne.s32.totalorder %s77, %s78
      %p87 = scmp.eq.s32.totalorder %s25, 0
      %p88 = por %p86, %p87
      %p89 = scmp.ne.s32.totalorder %s77, %s78
      %p90 = scmp.eq.s32.totalorder %s26, 2
      %p91 = por %p89, %p90
      %p93 = scmp.ne.s32.totalorder %s78, %s92
      %p94 = scmp.eq.s32.totalorder %s26, 0
      %p95 = por %p93, %p94
      %s97 = sadd.s32 %s96, 1
      %p100 = scmp.eq.s32.totalorder %s20, 2
      %p101 = scmp.ne.s32.totalorder %s96, %s98
      %p102 = scmp.eq.s32.totalorder %s20, 0
      %p103 = por %p101, %p102
      %p104 = scmp.ne.s32.totalorder %s96, %s98
      %p105 = scmp.eq.s32.totalorder %s25, 2
      %p106 = por %p104, %p105
      %p107 = scmp.ne.s32.totalorder %s98, %s99
      %p108 = scmp.eq.s32.totalorder %s25, 0
      %p109 = por %p107, %p108
      %p110 = scmp.ne.s32.totalorder %s98, %s99
      %p111 = scmp.eq.s32.totalorder %s26, 2
      %p112 = por %p110, %p111
      %p114 = scmp.ne.s32.totalorder %s99, %s113
      %p115 = scmp.eq.s32.totalorder %s26, 0
      %p116 = por %p114, %p115
      %s118 = sadd.s32 %s117, 1
      %p121 = scmp.eq.s32.totalorder %s20, 2
      %p122 = scmp.ne.s32.totalorder %s117, %s119
      %p123 = scmp.eq.s32.totalorder %s20, 0
      %p124 = por %p122, %p123
      %p125 = scmp.ne.s32.totalorder %s117, %s119
      %p126 = scmp.eq.s32.totalorder %s25, 2
      %p127 = por %p125, %p126
      %p128 = scmp.ne.s32.totalorder %s119, %s120
      %p129 = scmp.eq.s32.totalorder %s25, 0
      %p130 = por %p128, %p129
      %p131 = scmp.ne.s32.totalorder %s119, %s120
      %p132 = scmp.eq.s32.totalorder %s26, 2
      %p133 = por %p131, %p132
      %p135 = scmp.ne.s32.totalorder %s120, %s134
      %p136 = scmp.eq.s32.totalorder %s26, 0
      %p137 = por %p135, %p136
      %s139 = sadd.s32 %s138, 1
      %p142 = scmp.eq.s32.totalorder %s20, 2
      %p143 = scmp.ne.s32.totalorder %s138, %s140
      %p144 = scmp.eq.s32.totalorder %s20, 0
      %p145 = por %p143, %p144
      %p146 = scmp.ne.s32.totalorder %s138, %s140
      %p147 = scmp.eq.s32.totalorder %s25, 2
      %p148 = por %p146, %p147
      %p149 = scmp.ne.s32.totalorder %s140, %s141
      %p150 = scmp.eq.s32.totalorder %s25, 0
      %p151 = por %p149, %p150
      %p152 = scmp.ne.s32.totalorder %s140, %s141
      %p153 = scmp.eq.s32.totalorder %s26, 2
      %p154 = por %p152, %p153
      %p156 = scmp.ne.s32.totalorder %s141, %s155
      %p157 = scmp.eq.s32.totalorder %s26, 0
      %p158 = por %p156, %p157
      %s160 = sadd.s32 %s159, 1
      %p163 = scmp.eq.s32.totalorder %s20, 2
      %p164 = scmp.ne.s32.totalorder %s159, %s161
      %p165 = scmp.eq.s32.totalorder %s20, 0
      %p166 = por %p164, %p165
      %p167 = scmp.ne.s32.totalorder %s159, %s161
      %p168 = scmp.eq.s32.totalorder %s25, 2
      %p169 = por %p167, %p168
      %p170 = scmp.ne.s32.totalorder %s161, %s162
      %p171 = scmp.eq.s32.totalorder %s25, 0
      %p172 = por %p170, %p171
      %p173 = scmp.ne.s32.totalorder %s161, %s162
      %p174 = scmp.eq.s32.totalorder %s26, 2
      %p175 = por %p173, %p174
      %p177 = scmp.ne.s32.totalorder %s162, %s176
      %p178 = scmp.eq.s32.totalorder %s26, 0
      %p179 = por %p177, %p178
      %s181 = sadd.s32 %s180, 1
      %p184 = scmp.eq.s32.totalorder %s20, 2
      %p185 = scmp.ne.s32.totalorder %s180, %s182
      %p186 = scmp.eq.s32.totalorder %s20, 0
      %p187 = por %p185, %p186
      %p188 = scmp.ne.s32.totalorder %s180, %s182
      %p189 = scmp.eq.s32.totalorder %s25, 2
      %p190 = por %p188, %p189
      %p191 = scmp.ne.s32.totalorder %s182, %s183
      %p192 = scmp.eq.s32.totalorder %s25, 0
      %p193 = por %p191, %p192
      %p194 = scmp.ne.s32.totalorder %s182, %s183
      %p195 = scmp.eq.s32.totalorder %s26, 2
      %p196 = por %p194, %p195
      %p198 = scmp.ne.s32.totalorder %s183, %s197
      %p199 = scmp.eq.s32.totalorder %s26, 0
      %p200 = por %p198, %p199
      %s202 = sadd.s32 %s201, 1
      %p205 = scmp.eq.s32.totalorder %s20, 2
      %p206 = scmp.ne.s32.totalorder %s201, %s203
      %p207 = scmp.eq.s32.totalorder %s20, 0
      %p208 = por %p206, %p207
      %p209 = scmp.ne.s32.totalorder %s201, %s203
      %p210 = scmp.eq.s32.totalorder %s25, 2
      %p211 = por %p209, %p210
      %p212 = scmp.ne.s32.totalorder %s203, %s204
      %p213 = scmp.eq.s32.totalorder %s25, 0
      %p214 = por %p212, %p213
      %p215 = scmp.ne.s32.totalorder %s203, %s204
      %p216 = scmp.eq.s32.totalorder %s26, 2
      %p217 = por %p215, %p216
      %p219 = scmp.ne.s32.totalorder %s204, %s218
      %p220 = scmp.eq.s32.totalorder %s26, 0
      %p221 = por %p219, %p220
      %s222 = ssub.s32 %s20, %s27
      %p223 = scmp.eq.s32.totalorder %s222, 0
      %s225 = sadd.s32 %s224, 1
      %s226 = scalar_select %p223, %s224, %s225
      %p229 = pneg %p223
      %p230 = scmp.eq.s32.totalorder %s20, 2
      %p231 = por %p229, %p230
      %p232 = scmp.ne.s32.totalorder %s224, %s227
      %p233 = scmp.eq.s32.totalorder %s20, 0
      %p234 = por %p232, %p233
      %p235 = scmp.ne.s32.totalorder %s224, %s227
      %p236 = scmp.eq.s32.totalorder %s25, 2
      %p237 = por %p235, %p236
      %p238 = scmp.ne.s32.totalorder %s227, %s228
      %p239 = scmp.eq.s32.totalorder %s25, 0
      %p240 = por %p238, %p239
      %p241 = scmp.ne.s32.totalorder %s227, %s228
      %p242 = scmp.eq.s32.totalorder %s26, 2
      %p243 = por %p241, %p242
      %p245 = scmp.ne.s32.totalorder %s228, %s244
      %p246 = scmp.eq.s32.totalorder %s26, 0
      %p247 = por %p245, %p246
      %p248 = scmp.le.s32.totalorder 1, %s20
      %p249 = scmp.lt.s32.totalorder %s20, 4
      %p250 = pnand %p248, %p249
      %p251 = pneg %p250
      // Predicated region
      $region9: #{tpu_custom_call.1} parent=5 // pred_check
        _
      $region10: #{tpu_custom_call.1} parent=5 // pred_check_branch
        %253 = sbr.rel (%p250) target = $region12
      $region11: #{tpu_custom_call.1} parent=5 // pred_region
        %s254 = ssub.s32 %s20, 1
        // Predicated region
        $region13: #{tpu_custom_call.1} parent=11 // pred_check
          %p255 = pneg %p67
        $region14: #{tpu_custom_call.1} parent=11 // pred_check_branch
          %257 = sbr.rel (%p255) target = $region16
        $region15: #{tpu_custom_call.1} parent=11 // pred_region
          _
        $region16: #{tpu_custom_call.1} parent=11 // pred_fallthru
          _
        // Predicated region
        $region17: #{tpu_custom_call.1} parent=11 // pred_check
          %p258 = pneg %p88
        $region18: #{tpu_custom_call.1} parent=11 // pred_check_branch
          %260 = sbr.rel (%p258) target = $region20
        $region19: #{tpu_custom_call.1} parent=11 // pred_region
          _
        $region20: #{tpu_custom_call.1} parent=11 // pred_fallthru
          _
        // Predicated region
        $region21: #{tpu_custom_call.1} parent=11 // pred_check
          %p261 = pneg %p109
        $region22: #{tpu_custom_call.1} parent=11 // pred_check_branch
          %263 = sbr.rel (%p261) target = $region24
        $region23: #{tpu_custom_call.1} parent=11 // pred_region
          %265 = vsyncadd [#allocation3], 0
          %s266 = sshll.u32 %s3, 4
          %s267 = int_to_ptr.hbm [resolvable:$true] %s266
          %s268 = sshll.u32 [#allocation2], 4
          %s269 = int_to_ptr.vmem [resolvable:$true] %s268
          %274 = dma.hbm_to_vmem [thread:$0]  %s267, 2048, %s269, [#allocation3], 128, 128, 8
        $region24: #{tpu_custom_call.1} parent=11 // pred_fallthru
          _
        // Predicated region
        $region25: #{tpu_custom_call.1} parent=11 // pred_check
          %p275 = pneg %p130
        $region26: #{tpu_custom_call.1} parent=11 // pred_check_branch
          %277 = sbr.rel (%p275) target = $region28
        $region27: #{tpu_custom_call.1} parent=11 // pred_region
          _
        $region28: #{tpu_custom_call.1} parent=11 // pred_fallthru
          _
        // Predicated region
        $region29: #{tpu_custom_call.1} parent=11 // pred_check
          %p278 = pneg %p151
        $region30: #{tpu_custom_call.1} parent=11 // pred_check_branch
          %280 = sbr.rel (%p278) target = $region32
        $region31: #{tpu_custom_call.1} parent=11 // pred_region
          %282 = vsyncadd [#allocation6], 0
          %s283 = sshll.u32 %s5, 4
          %s284 = int_to_ptr.hbm [resolvable:$true] %s283
          %s285 = sshll.u32 [#allocation5], 4
          %s286 = int_to_ptr.vmem [resolvable:$true] %s285
          %291 = dma.hbm_to_vmem [thread:$0]  %s284, 2048, %s286, [#allocation6], 128, 128, 8
        $region32: #{tpu_custom_call.1} parent=11 // pred_fallthru
          _
        // Predicated region
        $region33: #{tpu_custom_call.1} parent=11 // pred_check
          %p292 = pneg %p172
        $region34: #{tpu_custom_call.1} parent=11 // pred_check_branch
          %294 = sbr.rel (%p292) target = $region36
        $region35: #{tpu_custom_call.1} parent=11 // pred_region
          _
        $region36: #{tpu_custom_call.1} parent=11 // pred_fallthru
          _
        // Predicated region
        $region37: #{tpu_custom_call.1} parent=11 // pred_check
          %p295 = pneg %p193
        $region38: #{tpu_custom_call.1} parent=11 // pred_check_branch
          %297 = sbr.rel (%p295) target = $region40
        $region39: #{tpu_custom_call.1} parent=11 // pred_region
          %299 = vsyncadd [#allocation6], 0
          %s300 = sshll.u32 %s7, 4
          %s301 = int_to_ptr.hbm [resolvable:$true] %s300
          %s302 = sshll.u32 [#allocation7], 4
          %s303 = int_to_ptr.vmem [resolvable:$true] %s302
          %308 = dma.hbm_to_vmem [thread:$0]  %s301, 2048, %s303, [#allocation6], 128, 128, 8
        $region40: #{tpu_custom_call.1} parent=11 // pred_fallthru
          _
        // Predicated region
        $region41: #{tpu_custom_call.1} parent=11 // pred_check
          %p309 = pneg %p214
        $region42: #{tpu_custom_call.1} parent=11 // pred_check_branch
          %311 = sbr.rel (%p309) target = $region44
        $region43: #{tpu_custom_call.1} parent=11 // pred_region
          _
        $region44: #{tpu_custom_call.1} parent=11 // pred_fallthru
          _
      $region12: #{tpu_custom_call.1} parent=5 // pred_fallthru
        _
      %p312 = scmp.lt.s32.totalorder %s20, 3
      // Predicated region
      $region45: #{tpu_custom_call.1} parent=5 // pred_check
        %p313 = pneg %p312
      $region46: #{tpu_custom_call.1} parent=5 // pred_check_branch
        %315 = sbr.rel (%p313) target = $region48
      $region47: #{tpu_custom_call.1} parent=5 // pred_region
        // Predicated region
        $region49: #{tpu_custom_call.1} parent=47 // pred_check
          %p316 = pneg %p40
        $region50: #{tpu_custom_call.1} parent=47 // pred_check_branch
          %318 = sbr.rel (%p316) target = $region52
        $region51: #{tpu_custom_call.1} parent=47 // pred_region
          %p319 = scmp.lt.s32.totalorder %s20, 2
          %s320 = scalar_select %p319, %s20, 2
          %s321 = smul.addr %s320, 8
          %s322 = scalar_lea.vmem %s0, %s321
        $region52: #{tpu_custom_call.1} parent=47 // pred_fallthru
          _
      $region48: #{tpu_custom_call.1} parent=5 // pred_fallthru
        _
      %p323 = scmp.le.s32.totalorder 1, %s20
      %p324 = scmp.lt.s32.totalorder %s20, 4
      %p325 = pnand %p323, %p324
      %p326 = pneg %p325
      // Predicated region
      $region53: #{tpu_custom_call.1} parent=5 // pred_check
        _
      $region54: #{tpu_custom_call.1} parent=5 // pred_check_branch
        %328 = sbr.rel (%p325) target = $region56
      $region55: #{tpu_custom_call.1} parent=5 // pred_region
        %s329 = ssub.s32 %s20, 1
        // Predicated region
        $region57: #{tpu_custom_call.1} parent=55 // pred_check
          %p330 = pneg %p109
        $region58: #{tpu_custom_call.1} parent=55 // pred_check_branch
          %332 = sbr.rel (%p330) target = $region60
        $region59: #{tpu_custom_call.1} parent=55 // pred_region
          %334 = dma.done [#allocation3], 2048
        $region60: #{tpu_custom_call.1} parent=55 // pred_fallthru
          _
        // Predicated region
        $region61: #{tpu_custom_call.1} parent=55 // pred_check
          %p335 = pneg %p151
        $region62: #{tpu_custom_call.1} parent=55 // pred_check_branch
          %337 = sbr.rel (%p335) target = $region64
        $region63: #{tpu_custom_call.1} parent=55 // pred_region
          %339 = dma.done [#allocation6], 2048
        $region64: #{tpu_custom_call.1} parent=55 // pred_fallthru
          _
        // Predicated region
        $region65: #{tpu_custom_call.1} parent=55 // pred_check
          %p340 = pneg %p193
        $region66: #{tpu_custom_call.1} parent=55 // pred_check_branch
          %342 = sbr.rel (%p340) target = $region68
        $region67: #{tpu_custom_call.1} parent=55 // pred_region
          %344 = dma.done [#allocation6], 2048
        $region68: #{tpu_custom_call.1} parent=55 // pred_fallthru
          _
        %p345 = scmp.lt.s32.totalorder %s25, 2
        %s346 = scalar_select %p345, %s25, 2
        %s347 = smul.addr %s346, 8
        %s348 = scalar_lea.vmem %s0, %s347
        %p349 = pneg %p46
        %p350 = pneg %p43
        %p351 = pneg %p67
        %p352 = pneg %p64
        %p353 = pneg %p88
        %p354 = pneg %p85
        %p355 = pneg %p109
        %p356 = pneg %p106
        %p357 = pneg %p130
        %p358 = pneg %p127
        %p359 = pneg %p151
        %p360 = pneg %p148
        %p361 = pneg %p172
        %p362 = pneg %p169
        %p363 = pneg %p193
        %p364 = pneg %p190
        %p365 = pneg %p214
        %p366 = pneg %p211
        %p367 = pneg %p240
        %p368 = pneg %p237
        %s369 = sand.u32 %s227, 1
        %s370 = scalar_lea.sflag [#allocation4], %s369
        %s371 = sand.u32 %s227, 1
        %s372 = smul.addr %s371, 8
        %s373 = scalar_lea.vmem [#allocation8], %s372
        %p374 = scmp.lt.s32.totalorder %s25, 2
        %s375 = scalar_select %p374, %s25, 2
        %s376 = smul.addr %s375, 8
        %s377 = scalar_lea.vmem %s0, %s376
        %v378 = vld [vmem:[%s377] sm:$0xff]
        %v379 = vld [vmem:[%s1] sm:$0xff]
        %v380 = vld [vmem:[%s2] sm:$0x1]
        %v382 = vperm.slane %v380, 0
        %vm384 = vcmask 64512
        %v386 = vsel %vm384, %v378, 0
        %388 = vmatpush.msra.mxu0 0.0
        %389 = vmatpush.msra.mxu0 0.0
        %390 = vmatpush.msra.mxu0 0.0
        %391 = vmatpush.msra.mxu0 0.0
        %392 = vmatpush.msra.mxu0 0.0
        %393 = vmatpush.msra.mxu0 0.0
        %394 = vmatpush.msra.mxu0 0.0
        %395 = vmatpush.msra.mxu0 0.0
        %396 = vmatpush.msra.mxu0 0.0
        %397 = vmatpush.msra.mxu0 0.0
        %398 = vmatpush.msra.mxu0 0.0
        %399 = vmatpush.msra.mxu0 0.0
        %400 = vmatpush.msra.mxu0 0.0
        %401 = vmatpush.msra.mxu0 0.0
        %402 = vmatpush.msra.mxu0 0.0
        %403 = vmatpush.msra.mxu0 %v379
        %404 = vmatmul.f32.gmra.mxu0 %v386
        %v405 = vpop.f32.mrf.mxu0
        %v406 = vadd.f32 %v382, %v405
        %407 = vdwg.mxu0
        %v408 = vmax.f32 %v406, 0.0
        %v409 = vld [vmem:[#allocation2] sm:$0xff]
        %v410 = vld [vmem:[#allocation2 + $0x8] sm:$0xff]
        %v411 = vld [vmem:[#allocation2 + $0x10] sm:$0xff]
        %v412 = vld [vmem:[#allocation2 + $0x18] sm:$0xff]
        %v413 = vld [vmem:[#allocation2 + $0x20] sm:$0xff]
        %v414 = vld [vmem:[#allocation2 + $0x28] sm:$0xff]
        %v415 = vld [vmem:[#allocation2 + $0x30] sm:$0xff]
        %v416 = vld [vmem:[#allocation2 + $0x38] sm:$0xff]
        %v417 = vld [vmem:[#allocation2 + $0x40] sm:$0xff]
        %v418 = vld [vmem:[#allocation2 + $0x48] sm:$0xff]
        %v419 = vld [vmem:[#allocation2 + $0x50] sm:$0xff]
        %v420 = vld [vmem:[#allocation2 + $0x58] sm:$0xff]
        %v421 = vld [vmem:[#allocation2 + $0x60] sm:$0xff]
        %v422 = vld [vmem:[#allocation2 + $0x68] sm:$0xff]
        %v423 = vld [vmem:[#allocation2 + $0x70] sm:$0xff]
        %v424 = vld [vmem:[#allocation2 + $0x78] sm:$0xff]
        %v425 = vld [vmem:[%s4] sm:$0x1]
        %v427 = vperm.slane %v425, 0
        %429 = vmatpush.msra.mxu0 %v424
        %430 = vmatpush.msra.mxu0 %v423
        %431 = vmatpush.msra.mxu0 %v422
        %432 = vmatpush.msra.mxu0 %v421
        %433 = vmatpush.msra.mxu0 %v420
        %434 = vmatpush.msra.mxu0 %v419
        %435 = vmatpush.msra.mxu0 %v418
        %436 = vmatpush.msra.mxu0 %v417
        %437 = vmatpush.msra.mxu0 %v416
        %438 = vmatpush.msra.mxu0 %v415
        %439 = vmatpush.msra.mxu0 %v414
        %440 = vmatpush.msra.mxu0 %v413
        %441 = vmatpush.msra.mxu0 %v412
        %442 = vmatpush.msra.mxu0 %v411
        %443 = vmatpush.msra.mxu0 %v410
        %444 = vmatpush.msra.mxu0 %v409
        %445 = vmatmul.f32.gmra.mxu0 %v408
        %v446 = vpop.f32.mrf.mxu0
        %v447 = vadd.f32 %v427, %v446
        %448 = vdwg.mxu0
        %v449 = vmax.f32 %v447, 0.0
        %v450 = vld [vmem:[#allocation5] sm:$0xff]
        %v451 = vld [vmem:[#allocation5 + $0x8] sm:$0xff]
        %v452 = vld [vmem:[#allocation5 + $0x10] sm:$0xff]
        %v453 = vld [vmem:[#allocation5 + $0x18] sm:$0xff]
        %v454 = vld [vmem:[#allocation5 + $0x20] sm:$0xff]
        %v455 = vld [vmem:[#allocation5 + $0x28] sm:$0xff]
        %v456 = vld [vmem:[#allocation5 + $0x30] sm:$0xff]
        %v457 = vld [vmem:[#allocation5 + $0x38] sm:$0xff]
        %v458 = vld [vmem:[#allocation5 + $0x40] sm:$0xff]
        %v459 = vld [vmem:[#allocation5 + $0x48] sm:$0xff]
        %v460 = vld [vmem:[#allocation5 + $0x50] sm:$0xff]
        %v461 = vld [vmem:[#allocation5 + $0x58] sm:$0xff]
        %v462 = vld [vmem:[#allocation5 + $0x60] sm:$0xff]
        %v463 = vld [vmem:[#allocation5 + $0x68] sm:$0xff]
        %v464 = vld [vmem:[#allocation5 + $0x70] sm:$0xff]
        %v465 = vld [vmem:[#allocation5 + $0x78] sm:$0xff]
        %v466 = vld [vmem:[%s6] sm:$0x1]
        %v468 = vperm.slane %v466, 0
        %470 = vmatpush.msra.mxu0 %v465
        %471 = vmatpush.msra.mxu0 %v464
        %472 = vmatpush.msra.mxu0 %v463
        %473 = vmatpush.msra.mxu0 %v462
        %474 = vmatpush.msra.mxu0 %v461
        %475 = vmatpush.msra.mxu0 %v460
        %476 = vmatpush.msra.mxu0 %v459
        %477 = vmatpush.msra.mxu0 %v458
        %478 = vmatpush.msra.mxu0 %v457
        %479 = vmatpush.msra.mxu0 %v456
        %480 = vmatpush.msra.mxu0 %v455
        %481 = vmatpush.msra.mxu0 %v454
        %482 = vmatpush.msra.mxu0 %v453
        %483 = vmatpush.msra.mxu0 %v452
        %484 = vmatpush.msra.mxu0 %v451
        %485 = vmatpush.msra.mxu0 %v450
        %486 = vmatmul.f32.gmra.mxu0 %v449
        %v487 = vpop.f32.mrf.mxu0
        %v488 = vadd.f32 %v468, %v487
        %489 = vdwg.mxu0
        %v490 = vmax.f32 %v488, 0.0
        %v491 = vld [vmem:[#allocation7] sm:$0xff]
        %v492 = vld [vmem:[#allocation7 + $0x8] sm:$0xff]
        %v493 = vld [vmem:[#allocation7 + $0x10] sm:$0xff]
        %v494 = vld [vmem:[#allocation7 + $0x18] sm:$0xff]
        %v495 = vld [vmem:[#allocation7 + $0x20] sm:$0xff]
        %v496 = vld [vmem:[#allocation7 + $0x28] sm:$0xff]
        %v497 = vld [vmem:[#allocation7 + $0x30] sm:$0xff]
        %v498 = vld [vmem:[#allocation7 + $0x38] sm:$0xff]
        %v499 = vld [vmem:[#allocation7 + $0x40] sm:$0xff]
        %v500 = vld [vmem:[#allocation7 + $0x48] sm:$0xff]
        %v501 = vld [vmem:[#allocation7 + $0x50] sm:$0xff]
        %v502 = vld [vmem:[#allocation7 + $0x58] sm:$0xff]
        %v503 = vld [vmem:[#allocation7 + $0x60] sm:$0xff]
        %v504 = vld [vmem:[#allocation7 + $0x68] sm:$0xff]
        %v505 = vld [vmem:[#allocation7 + $0x70] sm:$0xff]
        %v506 = vld [vmem:[#allocation7 + $0x78] sm:$0xff]
        %v507 = vld [vmem:[%s8] sm:$0x1]
        %v509 = vperm.slane %v507, 0
        %511 = vmatpush.msra.mxu0 %v506
        %512 = vmatpush.msra.mxu0 %v505
        %513 = vmatpush.msra.mxu0 %v504
        %514 = vmatpush.msra.mxu0 %v503
        %515 = vmatpush.msra.mxu0 %v502
        %516 = vmatpush.msra.mxu0 %v501
        %517 = vmatpush.msra.mxu0 %v500
        %518 = vmatpush.msra.mxu0 %v499
        %519 = vmatpush.msra.mxu0 %v498
        %520 = vmatpush.msra.mxu0 %v497
        %521 = vmatpush.msra.mxu0 %v496
        %522 = vmatpush.msra.mxu0 %v495
        %523 = vmatpush.msra.mxu0 %v494
        %524 = vmatpush.msra.mxu0 %v493
        %525 = vmatpush.msra.mxu0 %v492
        %526 = vmatpush.msra.mxu0 %v491
        %527 = vmatmul.f32.gmra.mxu0 %v490
        %v528 = vpop.f32.mrf.mxu0
        %v529 = vadd.f32 %v509, %v528
        %530 = vdwg.mxu0
        %531 = vst [vmem:[%s373] sm:$0xff] %v529
        %s532 = sand.u32 %s227, 1
        %s533 = scalar_lea.sflag [#allocation4], %s532
        %s534 = sand.u32 %s227, 1
        %s535 = smul.addr %s534, 8
        %s536 = scalar_lea.vmem [#allocation8], %s535
        // Predicated region
        $region69: #{tpu_custom_call.1} parent=55 // pred_check
          %p537 = pneg %p237
        $region70: #{tpu_custom_call.1} parent=55 // pred_check_branch
          %539 = sbr.rel (%p537) target = $region72
        $region71: #{tpu_custom_call.1} parent=55 // pred_region
          %541 = vsyncadd %s533, 0
          %s542 = smul.addr %s25, 8
          %s543 = scalar_lea.hbm %s9, %s542
          %s545 = sshll.u32 %s536, 4
          %s546 = int_to_ptr.vmem [resolvable:$true] %s545
          %s547 = sshll.u32 %s543, 4
          %s548 = int_to_ptr.hbm [resolvable:$true] %s547
          %550 = dma.vmem_to_hbm [thread:$0]  %s546, 128, %s548, %s533
        $region72: #{tpu_custom_call.1} parent=55 // pred_fallthru
          _
      $region56: #{tpu_custom_call.1} parent=5 // pred_fallthru
        _
      %p551 = scmp.le.s32.totalorder 2, %s20
      // Predicated region
      $region73: #{tpu_custom_call.1} parent=5 // pred_check
        %p552 = pneg %p551
      $region74: #{tpu_custom_call.1} parent=5 // pred_check_branch
        %554 = sbr.rel (%p552) target = $region76
      $region75: #{tpu_custom_call.1} parent=5 // pred_region
        %s555 = ssub.s32 %s20, 2
        // Predicated region
        $region77: #{tpu_custom_call.1} parent=75 // pred_check
          %p556 = pneg %p243
        $region78: #{tpu_custom_call.1} parent=75 // pred_check_branch
          %558 = sbr.rel (%p556) target = $region80
        $region79: #{tpu_custom_call.1} parent=75 // pred_region
          %s559 = sand.u32 %s228, 1
          %s560 = scalar_lea.sflag [#allocation4], %s559
          %s561 = sand.u32 %s228, 1
          %s562 = smul.addr %s561, 8
          %s563 = scalar_lea.vmem [#allocation8], %s562
          %565 = dma.done %s560, 128
        $region80: #{tpu_custom_call.1} parent=75 // pred_fallthru
          _
      $region76: #{tpu_custom_call.1} parent=5 // pred_fallthru
        _
    $region6: #{tpu_custom_call.1} parent=1 // loop_footer
      %s24 = sadd.s32 1, %s20
    $region7: #{tpu_custom_call.1} parent=1 // loop_footer_branch
      %19 = sbr.rel target = $region3
    $region8: #{tpu_custom_call.1} parent=1 // loop_exit
      _
    %566 = vsyncpa [#allocation3], 1
    %s567 = scalar_lea.sflag [#allocation3], 1
    %568 = vsyncpa %s567, 1
    %569 = vsyncpa [#allocation6], 1
    %570 = vsyncpa [#allocation4], 1
    %s571 = scalar_lea.sflag [#allocation4], 1
    %572 = vsyncpa %s571, 1

// kernel: tpu_custom_call.1
$region0: #{tpu_custom_call.1}
  #allocation0 [shape = 'u32[]', space=smem, size = 0x4, offset = 0x4, fixed_abs, tag = 'smem constant byte address 0x4 - core index']
  #allocation1 [shape = 'u32[72,128]{1,0:T(1,128)}', space=vmem, size = 0x9000, scoped, tag = 'internal scratch']
  %s0 = inlined_call_operand.vmem [shape: f32[24,8], index: 0, kind: input, shape index: {}]
  %s1 = inlined_call_operand.vmem [shape: f32[8,128], index: 1, kind: input, shape index: {}]
  %s2 = inlined_call_operand.vmem [shape: f32[1,128], index: 2, kind: input, shape index: {}]
  %s3 = inlined_call_operand.hbm [shape: f32[128,128], index: 3, kind: input, shape index: {}]
  %s4 = inlined_call_operand.vmem [shape: f32[1,128], index: 4, kind: input, shape index: {}]
  %s5 = inlined_call_operand.hbm [shape: f32[128,128], index: 5, kind: input, shape index: {}]
  %s6 = inlined_call_operand.vmem [shape: f32[1,128], index: 6, kind: input, shape index: {}]
  %s7 = inlined_call_operand.hbm [shape: f32[128,128], index: 7, kind: input, shape index: {}]
  %s8 = inlined_call_operand.vmem [shape: f32[1,128], index: 8, kind: input, shape index: {}]
  %s9 = inlined_call_operand.hbm [shape: f32[24,128], index: 9, kind: output, shape index: {}]
  %s10 = sld [smem:[#allocation0]]
  $region81: #{tpu_custom_call.1} parent=0
    _
  %s12 = ssub.s32 1, %s10
  %s13 = scalar_select 0, %s12, %s10
  $region1: #{tpu_custom_call.1} parent=0
    #allocation2 [shape = 'u8[65536]{0}', space=vmem, size = 0x10000, scoped, tag = 'input window, operand 3, single buffered']
    #allocation3 [shape = 's32[2]{0}', space=sflag, size = 0x8, scoped, tag = 'scoped memory for tpu_custom_call.1']
    #allocation4 [shape = 's32[2]{0}', space=sflag, size = 0x8, scoped, tag = 'scoped memory for tpu_custom_call.1']
    #allocation5 [shape = 'u8[65536]{0}', space=vmem, size = 0x10000, scoped, tag = 'input window, operand 5, single buffered']
    #allocation6 [shape = 's32[1]{0}', space=sflag, size = 0x4, scoped, tag = 'scoped memory for tpu_custom_call.1']
    #allocation7 [shape = 'u8[65536]{0}', space=vmem, size = 0x10000, scoped, tag = 'input window, operand 7, single buffered']
    #allocation8 [shape = 'u8[8192]{0}', space=vmem, size = 0x2000, scoped, tag = 'output window, operand 0']
    %14 = vsyncpa [#allocation3], 0
    %15 = vsyncpa [#allocation6], 0
    %16 = vsyncpa [#allocation4], 0
    %s17 = scalar_lea.sflag [#allocation4], 1
    %18 = vsyncpa %s17, 0
    loop: start=0, step=1, limit=5
    $region2: #{tpu_custom_call.1} parent=1 // loop_pre_header
      _
    $region3: #{tpu_custom_call.1} parent=1 // loop_header
      %s20 = sphi 0, %s24
      %p21 = scmp.ge.s32.totalorder %s20, 5
      %s30 = sphi 0, %s32
      %s33 = sphi 0, %s30
      %s34 = sphi 0, %s33
      %s50 = sphi 0, %s34
      %s54 = sphi 0, %s54
      %s56 = sphi 0, %s54
      %s57 = sphi 0, %s56
      %s71 = sphi 0, %s57
      %s75 = sphi 0, %s75
      %s77 = sphi 0, %s75
      %s78 = sphi 0, %s77
      %s92 = sphi 0, %s78
      %s96 = sphi 0, %s96
      %s98 = sphi 0, %s96
      %s99 = sphi 0, %s98
      %s113 = sphi 0, %s99
      %s117 = sphi 0, %s117
      %s119 = sphi 0, %s117
      %s120 = sphi 0, %s119
      %s134 = sphi 0, %s120
      %s138 = sphi 0, %s138
      %s140 = sphi 0, %s138
      %s141 = sphi 0, %s140
      %s155 = sphi 0, %s141
      %s159 = sphi 0, %s159
      %s161 = sphi 0, %s159
      %s162 = sphi 0, %s161
      %s176 = sphi 0, %s162
      %s180 = sphi 0, %s180
      %s182 = sphi 0, %s180
      %s183 = sphi 0, %s182
      %s197 = sphi 0, %s183
      %s201 = sphi 0, %s201
      %s203 = sphi 0, %s201
      %s204 = sphi 0, %s203
      %s218 = sphi 0, %s204
      %s224 = sphi 0, %s226
      %s227 = sphi 0, %s224
      %s228 = sphi 0, %s227
      %s244 = sphi 0, %s228
    $region4: #{tpu_custom_call.1} parent=1 // loop_header_branch
      %23 = sbr.rel (%p21) target = $region8
    $region5: #{tpu_custom_call.1} parent=1 // loop_body
      %s25 = ssub.s32 %s20, 1
      %s26 = ssub.s32 %s20, 2
      %s27 = sadd.s32 %s20, 1
      %s28 = ssub.s32 %s20, %s27
      %p29 = scmp.eq.s32.totalorder %s28, 0
      %s31 = sadd.s32 %s30, 1
      %s32 = scalar_select %p29, %s30, %s31
      %p35 = pneg %p29
      %p36 = scmp.eq.s32.totalorder %s20, 2
      %p37 = por %p35, %p36
      %p38 = scmp.ne.s32.totalorder %s30, %s33
      %p39 = scmp.eq.s32.totalorder %s20, 0
      %p40 = por %p38, %p39
      %p41 = scmp.ne.s32.totalorder %s30, %s33
      %p42 = scmp.eq.s32.totalorder %s25, 2
      %p43 = por %p41, %p42
      %p44 = scmp.ne.s32.totalorder %s33, %s34
      %p45 = scmp.eq.s32.totalorder %s25, 0
      %p46 = por %p44, %p45
      %p47 = scmp.ne.s32.totalorder %s33, %s34
      %p48 = scmp.eq.s32.totalorder %s26, 2
      %p49 = por %p47, %p48
      %p51 = scmp.ne.s32.totalorder %s34, %s50
      %p52 = scmp.eq.s32.totalorder %s26, 0
      %p53 = por %p51, %p52
      %s55 = sadd.s32 %s54, 1
      %p58 = scmp.eq.s32.totalorder %s20, 2
      %p59 = scmp.ne.s32.totalorder %s54, %s56
      %p60 = scmp.eq.s32.totalorder %s20, 0
      %p61 = por %p59, %p60
      %p62 = scmp.ne.s32.totalorder %s54, %s56
      %p63 = scmp.eq.s32.totalorder %s25, 2
      %p64 = por %p62, %p63
      %p65 = scmp.ne.s32.totalorder %s56, %s57
      %p66 = scmp.eq.s32.totalorder %s25, 0
      %p67 = por %p65, %p66
      %p68 = scmp.ne.s32.totalorder %s56, %s57
      %p69 = scmp.eq.s32.totalorder %s26, 2
      %p70 = por %p68, %p69
      %p72 = scmp.ne.s32.totalorder %s57, %s71
      %p73 = scmp.eq.s32.totalorder %s26, 0
      %p74 = por %p72, %p73
      %s76 = sadd.s32 %s75, 1
      %p79 = scmp.eq.s32.totalorder %s20, 2
      %p80 = scmp.ne.s32.totalorder %s75, %s77
      %p81 = scmp.eq.s32.totalorder %s20, 0
      %p82 = por %p80, %p81
      %p83 = scmp.ne.s32.totalorder %s75, %s77
      %p84 = scmp.eq.s32.totalorder %s25, 2
      %p85 = por %p83, %p84
      %p86 = scmp.ne.s32.totalorder %s77, %s78
      %p87 = scmp.eq.s32.totalorder %s25, 0
      %p88 = por %p86, %p87
      %p89 = scmp.ne.s32.totalorder %s77, %s78
      %p90 = scmp.eq.s32.totalorder %s26, 2
      %p91 = por %p89, %p90
      %p93 = scmp.ne.s32.totalorder %s78, %s92
      %p94 = scmp.eq.s32.totalorder %s26, 0
      %p95 = por %p93, %p94
      %s97 = sadd.s32 %s96, 1
      %p100 = scmp.eq.s32.totalorder %s20, 2
      %p101 = scmp.ne.s32.totalorder %s96, %s98
      %p102 = scmp.eq.s32.totalorder %s20, 0
      %p103 = por %p101, %p102
      %p104 = scmp.ne.s32.totalorder %s96, %s98
      %p105 = scmp.eq.s32.totalorder %s25, 2
      %p106 = por %p104, %p105
      %p107 = scmp.ne.s32.totalorder %s98, %s99
      %p108 = scmp.eq.s32.totalorder %s25, 0
      %p109 = por %p107, %p108
      %p110 = scmp.ne.s32.totalorder %s98, %s99
      %p111 = scmp.eq.s32.totalorder %s26, 2
      %p112 = por %p110, %p111
      %p114 = scmp.ne.s32.totalorder %s99, %s113
      %p115 = scmp.eq.s32.totalorder %s26, 0
      %p116 = por %p114, %p115
      %s118 = sadd.s32 %s117, 1
      %p121 = scmp.eq.s32.totalorder %s20, 2
      %p122 = scmp.ne.s32.totalorder %s117, %s119
      %p123 = scmp.eq.s32.totalorder %s20, 0
      %p124 = por %p122, %p123
      %p125 = scmp.ne.s32.totalorder %s117, %s119
      %p126 = scmp.eq.s32.totalorder %s25, 2
      %p127 = por %p125, %p126
      %p128 = scmp.ne.s32.totalorder %s119, %s120
      %p129 = scmp.eq.s32.totalorder %s25, 0
      %p130 = por %p128, %p129
      %p131 = scmp.ne.s32.totalorder %s119, %s120
      %p132 = scmp.eq.s32.totalorder %s26, 2
      %p133 = por %p131, %p132
      %p135 = scmp.ne.s32.totalorder %s120, %s134
      %p136 = scmp.eq.s32.totalorder %s26, 0
      %p137 = por %p135, %p136
      %s139 = sadd.s32 %s138, 1
      %p142 = scmp.eq.s32.totalorder %s20, 2
      %p143 = scmp.ne.s32.totalorder %s138, %s140
      %p144 = scmp.eq.s32.totalorder %s20, 0
      %p145 = por %p143, %p144
      %p146 = scmp.ne.s32.totalorder %s138, %s140
      %p147 = scmp.eq.s32.totalorder %s25, 2
      %p148 = por %p146, %p147
      %p149 = scmp.ne.s32.totalorder %s140, %s141
      %p150 = scmp.eq.s32.totalorder %s25, 0
      %p151 = por %p149, %p150
      %p152 = scmp.ne.s32.totalorder %s140, %s141
      %p153 = scmp.eq.s32.totalorder %s26, 2
      %p154 = por %p152, %p153
      %p156 = scmp.ne.s32.totalorder %s141, %s155
      %p157 = scmp.eq.s32.totalorder %s26, 0
      %p158 = por %p156, %p157
      %s160 = sadd.s32 %s159, 1
      %p163 = scmp.eq.s32.totalorder %s20, 2
      %p164 = scmp.ne.s32.totalorder %s159, %s161
      %p165 = scmp.eq.s32.totalorder %s20, 0
      %p166 = por %p164, %p165
      %p167 = scmp.ne.s32.totalorder %s159, %s161
      %p168 = scmp.eq.s32.totalorder %s25, 2
      %p169 = por %p167, %p168
      %p170 = scmp.ne.s32.totalorder %s161, %s162
      %p171 = scmp.eq.s32.totalorder %s25, 0
      %p172 = por %p170, %p171
      %p173 = scmp.ne.s32.totalorder %s161, %s162
      %p174 = scmp.eq.s32.totalorder %s26, 2
      %p175 = por %p173, %p174
      %p177 = scmp.ne.s32.totalorder %s162, %s176
      %p178 = scmp.eq.s32.totalorder %s26, 0
      %p179 = por %p177, %p178
      %s181 = sadd.s32 %s180, 1
      %p184 = scmp.eq.s32.totalorder %s20, 2
      %p185 = scmp.ne.s32.totalorder %s180, %s182
      %p186 = scmp.eq.s32.totalorder %s20, 0
      %p187 = por %p185, %p186
      %p188 = scmp.ne.s32.totalorder %s180, %s182
      %p189 = scmp.eq.s32.totalorder %s25, 2
      %p190 = por %p188, %p189
      %p191 = scmp.ne.s32.totalorder %s182, %s183
      %p192 = scmp.eq.s32.totalorder %s25, 0
      %p193 = por %p191, %p192
      %p194 = scmp.ne.s32.totalorder %s182, %s183
      %p195 = scmp.eq.s32.totalorder %s26, 2
      %p196 = por %p194, %p195
      %p198 = scmp.ne.s32.totalorder %s183, %s197
      %p199 = scmp.eq.s32.totalorder %s26, 0
      %p200 = por %p198, %p199
      %s202 = sadd.s32 %s201, 1
      %p205 = scmp.eq.s32.totalorder %s20, 2
      %p206 = scmp.ne.s32.totalorder %s201, %s203
      %p207 = scmp.eq.s32.totalorder %s20, 0
      %p208 = por %p206, %p207
      %p209 = scmp.ne.s32.totalorder %s201, %s203
      %p210 = scmp.eq.s32.totalorder %s25, 2
      %p211 = por %p209, %p210
      %p212 = scmp.ne.s32.totalorder %s203, %s204
      %p213 = scmp.eq.s32.totalorder %s25, 0
      %p214 = por %p212, %p213
      %p215 = scmp.ne.s32.totalorder %s203, %s204
      %p216 = scmp.eq.s32.totalorder %s26, 2
      %p217 = por %p215, %p216
      %p219 = scmp.ne.s32.totalorder %s204, %s218
      %p220 = scmp.eq.s32.totalorder %s26, 0
      %p221 = por %p219, %p220
      %s222 = ssub.s32 %s20, %s27
      %p223 = scmp.eq.s32.totalorder %s222, 0
      %s225 = sadd.s32 %s224, 1
      %s226 = scalar_select %p223, %s224, %s225
      %p229 = pneg %p223
      %p230 = scmp.eq.s32.totalorder %s20, 2
      %p231 = por %p229, %p230
      %p232 = scmp.ne.s32.totalorder %s224, %s227
      %p233 = scmp.eq.s32.totalorder %s20, 0
      %p234 = por %p232, %p233
      %p235 = scmp.ne.s32.totalorder %s224, %s227
      %p236 = scmp.eq.s32.totalorder %s25, 2
      %p237 = por %p235, %p236
      %p238 = scmp.ne.s32.totalorder %s227, %s228
      %p239 = scmp.eq.s32.totalorder %s25, 0
      %p240 = por %p238, %p239
      %p241 = scmp.ne.s32.totalorder %s227, %s228
      %p242 = scmp.eq.s32.totalorder %s26, 2
      %p243 = por %p241, %p242
      %p245 = scmp.ne.s32.totalorder %s228, %s244
      %p246 = scmp.eq.s32.totalorder %s26, 0
      %p247 = por %p245, %p246
      %p248 = scmp.le.s32.totalorder 1, %s20
      %p249 = scmp.lt.s32.totalorder %s20, 4
      %p250 = pnand %p248, %p249
      %p251 = pneg %p250
      // Predicated region
      $region9: #{tpu_custom_call.1} parent=5 // pred_check
        _
      $region10: #{tpu_custom_call.1} parent=5 // pred_check_branch
        %253 = sbr.rel (%p250) target = $region12
      $region11: #{tpu_custom_call.1} parent=5 // pred_region
        %s254 = ssub.s32 %s20, 1
        // Predicated region
        $region13: #{tpu_custom_call.1} parent=11 // pred_check
          %p255 = pneg %p67
        $region14: #{tpu_custom_call.1} parent=11 // pred_check_branch
          %257 = sbr.rel (%p255) target = $region16
        $region15: #{tpu_custom_call.1} parent=11 // pred_region
          _
        $region16: #{tpu_custom_call.1} parent=11 // pred_fallthru
          _
        // Predicated region
        $region17: #{tpu_custom_call.1} parent=11 // pred_check
          %p258 = pneg %p88
        $region18: #{tpu_custom_call.1} parent=11 // pred_check_branch
          %260 = sbr.rel (%p258) target = $region20
        $region19: #{tpu_custom_call.1} parent=11 // pred_region
          _
        $region20: #{tpu_custom_call.1} parent=11 // pred_fallthru
          _
        // Predicated region
        $region21: #{tpu_custom_call.1} parent=11 // pred_check
          %p261 = pneg %p109
        $region22: #{tpu_custom_call.1} parent=11 // pred_check_branch
          %263 = sbr.rel (%p261) target = $region24
        $region23: #{tpu_custom_call.1} parent=11 // pred_region
          %265 = vsyncadd [#allocation3], 0
          %s266 = sshll.u32 %s3, 4
          %s267 = int_to_ptr.hbm [resolvable:$true] %s266
          %s268 = sshll.u32 [#allocation2], 4
          %s269 = int_to_ptr.vmem [resolvable:$true] %s268
          %274 = dma.hbm_to_vmem [thread:$0]  %s267, 2048, %s269, [#allocation3], 128, 128, 8
        $region24: #{tpu_custom_call.1} parent=11 // pred_fallthru
          _
        // Predicated region
        $region25: #{tpu_custom_call.1} parent=11 // pred_check
          %p275 = pneg %p130
        $region26: #{tpu_custom_call.1} parent=11 // pred_check_branch
          %277 = sbr.rel (%p275) target = $region28
        $region27: #{tpu_custom_call.1} parent=11 // pred_region
          _
        $region28: #{tpu_custom_call.1} parent=11 // pred_fallthru
          _
        // Predicated region
        $region29: #{tpu_custom_call.1} parent=11 // pred_check
          %p278 = pneg %p151
        $region30: #{tpu_custom_call.1} parent=11 // pred_check_branch
          %280 = sbr.rel (%p278) target = $region32
        $region31: #{tpu_custom_call.1} parent=11 // pred_region
          %282 = vsyncadd [#allocation6], 0
          %s283 = sshll.u32 %s5, 4
          %s284 = int_to_ptr.hbm [resolvable:$true] %s283
          %s285 = sshll.u32 [#allocation5], 4
          %s286 = int_to_ptr.vmem [resolvable:$true] %s285
          %291 = dma.hbm_to_vmem [thread:$0]  %s284, 2048, %s286, [#allocation6], 128, 128, 8
        $region32: #{tpu_custom_call.1} parent=11 // pred_fallthru
          _
        // Predicated region
        $region33: #{tpu_custom_call.1} parent=11 // pred_check
          %p292 = pneg %p172
        $region34: #{tpu_custom_call.1} parent=11 // pred_check_branch
          %294 = sbr.rel (%p292) target = $region36
        $region35: #{tpu_custom_call.1} parent=11 // pred_region
          _
        $region36: #{tpu_custom_call.1} parent=11 // pred_fallthru
          _
        // Predicated region
        $region37: #{tpu_custom_call.1} parent=11 // pred_check
          %p295 = pneg %p193
        $region38: #{tpu_custom_call.1} parent=11 // pred_check_branch
          %297 = sbr.rel (%p295) target = $region40
        $region39: #{tpu_custom_call.1} parent=11 // pred_region
          %299 = vsyncadd [#allocation6], 0
          %s300 = sshll.u32 %s7, 4
          %s301 = int_to_ptr.hbm [resolvable:$true] %s300
          %s302 = sshll.u32 [#allocation7], 4
          %s303 = int_to_ptr.vmem [resolvable:$true] %s302
          %308 = dma.hbm_to_vmem [thread:$0]  %s301, 2048, %s303, [#allocation6], 128, 128, 8
        $region40: #{tpu_custom_call.1} parent=11 // pred_fallthru
          _
        // Predicated region
        $region41: #{tpu_custom_call.1} parent=11 // pred_check
          %p309 = pneg %p214
        $region42: #{tpu_custom_call.1} parent=11 // pred_check_branch
          %311 = sbr.rel (%p309) target = $region44
        $region43: #{tpu_custom_call.1} parent=11 // pred_region
          _
        $region44: #{tpu_custom_call.1} parent=11 // pred_fallthru
          _
      $region12: #{tpu_custom_call.1} parent=5 // pred_fallthru
        _
      %p312 = scmp.lt.s32.totalorder %s20, 3
      // Predicated region
      $region45: #{tpu_custom_call.1} parent=5 // pred_check
        %p313 = pneg %p312
      $region46: #{tpu_custom_call.1} parent=5 // pred_check_branch
        %315 = sbr.rel (%p313) target = $region48
      $region47: #{tpu_custom_call.1} parent=5 // pred_region
        // Predicated region
        $region49: #{tpu_custom_call.1} parent=47 // pred_check
          %p316 = pneg %p40
        $region50: #{tpu_custom_call.1} parent=47 // pred_check_branch
          %318 = sbr.rel (%p316) target = $region52
        $region51: #{tpu_custom_call.1} parent=47 // pred_region
          %p319 = scmp.lt.s32.totalorder %s20, 2
          %s320 = scalar_select %p319, %s20, 2
          %s321 = smul.addr %s320, 8
          %s322 = scalar_lea.vmem %s0, %s321
        $region52: #{tpu_custom_call.1} parent=47 // pred_fallthru
          _
      $region48: #{tpu_custom_call.1} parent=5 // pred_fallthru
        _
      %p323 = scmp.le.s32.totalorder 1, %s20
      %p324 = scmp.lt.s32.totalorder %s20, 4
      %p325 = pnand %p323, %p324
      %p326 = pneg %p325
      // Predicated region
      $region53: #{tpu_custom_call.1} parent=5 // pred_check
        _
      $region54: #{tpu_custom_call.1} parent=5 // pred_check_branch
        %328 = sbr.rel (%p325) target = $region56
      $region55: #{tpu_custom_call.1} parent=5 // pred_region
        %s329 = ssub.s32 %s20, 1
        // Predicated region
        $region57: #{tpu_custom_call.1} parent=55 // pred_check
          %p330 = pneg %p109
        $region58: #{tpu_custom_call.1} parent=55 // pred_check_branch
          %332 = sbr.rel (%p330) target = $region60
        $region59: #{tpu_custom_call.1} parent=55 // pred_region
          %334 = dma.done [#allocation3], 2048
        $region60: #{tpu_custom_call.1} parent=55 // pred_fallthru
          _
        // Predicated region
        $region61: #{tpu_custom_call.1} parent=55 // pred_check
          %p335 = pneg %p151
        $region62: #{tpu_custom_call.1} parent=55 // pred_check_branch
          %337 = sbr.rel (%p335) target = $region64
        $region63: #{tpu_custom_call.1} parent=55 // pred_region
          %339 = dma.done [#allocation6], 2048
        $region64: #{tpu_custom_call.1} parent=55 // pred_fallthru
          _
        // Predicated region
        $region65: #{tpu_custom_call.1} parent=55 // pred_check
          %p340 = pneg %p193
        $region66: #{tpu_custom_call.1} parent=55 // pred_check_branch
          %342 = sbr.rel (%p340) target = $region68
        $region67: #{tpu_custom_call.1} parent=55 // pred_region
          %344 = dma.done [#allocation6], 2048
        $region68: #{tpu_custom_call.1} parent=55 // pred_fallthru
          _
        %p345 = scmp.lt.s32.totalorder %s25, 2
        %s346 = scalar_select %p345, %s25, 2
        %s347 = smul.addr %s346, 8
        %s348 = scalar_lea.vmem %s0, %s347
        %p349 = pneg %p46
        %p350 = pneg %p43
        %p351 = pneg %p67
        %p352 = pneg %p64
        %p353 = pneg %p88
        %p354 = pneg %p85
        %p355 = pneg %p109
        %p356 = pneg %p106
        %p357 = pneg %p130
        %p358 = pneg %p127
        %p359 = pneg %p151
        %p360 = pneg %p148
        %p361 = pneg %p172
        %p362 = pneg %p169
        %p363 = pneg %p193
        %p364 = pneg %p190
        %p365 = pneg %p214
        %p366 = pneg %p211
        %p367 = pneg %p240
        %p368 = pneg %p237
        %s369 = sand.u32 %s227, 1
        %s370 = scalar_lea.sflag [#allocation4], %s369
        %s371 = sand.u32 %s227, 1
        %s372 = smul.addr %s371, 8
        %s373 = scalar_lea.vmem [#allocation8], %s372
        %p374 = scmp.lt.s32.totalorder %s25, 2
        %s375 = scalar_select %p374, %s25, 2
        %s376 = smul.addr %s375, 8
        %s377 = scalar_lea.vmem %s0, %s376
        %v378 = vld [vmem:[%s377] sm:$0xff]
        %v379 = vld [vmem:[%s1] sm:$0xff]
        %v380 = vld [vmem:[%s2] sm:$0x1]
        %v382 = vperm.slane %v380, 0
        %vm384 = vcmask 64512
        %v386 = vsel %vm384, %v378, 0
        %388 = vmatpush.msra.mxu0 0.0
        %389 = vmatpush.msra.mxu0 0.0
        %390 = vmatpush.msra.mxu0 0.0
        %391 = vmatpush.msra.mxu0 0.0
        %392 = vmatpush.msra.mxu0 0.0
        %393 = vmatpush.msra.mxu0 0.0
        %394 = vmatpush.msra.mxu0 0.0
        %395 = vmatpush.msra.mxu0 0.0
        %396 = vmatpush.msra.mxu0 0.0
        %397 = vmatpush.msra.mxu0 0.0
        %398 = vmatpush.msra.mxu0 0.0
        %399 = vmatpush.msra.mxu0 0.0
        %400 = vmatpush.msra.mxu0 0.0
        %401 = vmatpush.msra.mxu0 0.0
        %402 = vmatpush.msra.mxu0 0.0
        %403 = vmatpush.msra.mxu0 %v379
        %404 = vmatmul.f32.gmra.mxu0 %v386
        %v405 = vpop.f32.mrf.mxu0
        %v406 = vadd.f32 %v382, %v405
        %407 = vdwg.mxu0
        %v408 = vmax.f32 %v406, 0.0
        %v409 = vld [vmem:[#allocation2] sm:$0xff]
        %v410 = vld [vmem:[#allocation2 + $0x8] sm:$0xff]
        %v411 = vld [vmem:[#allocation2 + $0x10] sm:$0xff]
        %v412 = vld [vmem:[#allocation2 + $0x18] sm:$0xff]
        %v413 = vld [vmem:[#allocation2 + $0x20] sm:$0xff]
        %v414 = vld [vmem:[#allocation2 + $0x28] sm:$0xff]
        %v415 = vld [vmem:[#allocation2 + $0x30] sm:$0xff]
        %v416 = vld [vmem:[#allocation2 + $0x38] sm:$0xff]
        %v417 = vld [vmem:[#allocation2 + $0x40] sm:$0xff]
        %v418 = vld [vmem:[#allocation2 + $0x48] sm:$0xff]
        %v419 = vld [vmem:[#allocation2 + $0x50] sm:$0xff]
        %v420 = vld [vmem:[#allocation2 + $0x58] sm:$0xff]
        %v421 = vld [vmem:[#allocation2 + $0x60] sm:$0xff]
        %v422 = vld [vmem:[#allocation2 + $0x68] sm:$0xff]
        %v423 = vld [vmem:[#allocation2 + $0x70] sm:$0xff]
        %v424 = vld [vmem:[#allocation2 + $0x78] sm:$0xff]
        %v425 = vld [vmem:[%s4] sm:$0x1]
        %v427 = vperm.slane %v425, 0
        %429 = vmatpush.msra.mxu0 %v424
        %430 = vmatpush.msra.mxu0 %v423
        %431 = vmatpush.msra.mxu0 %v422
        %432 = vmatpush.msra.mxu0 %v421
        %433 = vmatpush.msra.mxu0 %v420
        %434 = vmatpush.msra.mxu0 %v419
        %435 = vmatpush.msra.mxu0 %v418
        %436 = vmatpush.msra.mxu0 %v417
        %437 = vmatpush.msra.mxu0 %v416
        %438 = vmatpush.msra.mxu0 %v415
        %439 = vmatpush.msra.mxu0 %v414
        %440 = vmatpush.msra.mxu0 %v413
        %441 = vmatpush.msra.mxu0 %v412
        %442 = vmatpush.msra.mxu0 %v411
        %443 = vmatpush.msra.mxu0 %v410
        %444 = vmatpush.msra.mxu0 %v409
        %445 = vmatmul.f32.gmra.mxu0 %v408
        %v446 = vpop.f32.mrf.mxu0
        %v447 = vadd.f32 %v427, %v446
        %448 = vdwg.mxu0
        %v449 = vmax.f32 %v447, 0.0
        %v450 = vld [vmem:[#allocation5] sm:$0xff]
        %v451 = vld [vmem:[#allocation5 + $0x8] sm:$0xff]
        %v452 = vld [vmem:[#allocation5 + $0x10] sm:$0xff]
        %v453 = vld [vmem:[#allocation5 + $0x18] sm:$0xff]
        %v454 = vld [vmem:[#allocation5 + $0x20] sm:$0xff]
        %v455 = vld [vmem:[#allocation5 + $0x28] sm:$0xff]
        %v456 = vld [vmem:[#allocation5 + $0x30] sm:$0xff]
        %v457 = vld [vmem:[#allocation5 + $0x38] sm:$0xff]
        %v458 = vld [vmem:[#allocation5 + $0x40] sm:$0xff]
        %v459 = vld [vmem:[#allocation5 + $0x48] sm:$0xff]
        %v460 = vld [vmem:[#allocation5 + $0x50] sm:$0xff]
        %v461 = vld [vmem:[#allocation5 + $0x58] sm:$0xff]
        %v462 = vld [vmem:[#allocation5 + $0x60] sm:$0xff]
        %v463 = vld [vmem:[#allocation5 + $0x68] sm:$0xff]
        %v464 = vld [vmem:[#allocation5 + $0x70] sm:$0xff]
        %v465 = vld [vmem:[#allocation5 + $0x78] sm:$0xff]
        %v466 = vld [vmem:[%s6] sm:$0x1]
        %v468 = vperm.slane %v466, 0
        %470 = vmatpush.msra.mxu0 %v465
        %471 = vmatpush.msra.mxu0 %v464
        %472 = vmatpush.msra.mxu0 %v463
        %473 = vmatpush.msra.mxu0 %v462
        %474 = vmatpush.msra.mxu0 %v461
        %475 = vmatpush.msra.mxu0 %v460
        %476 = vmatpush.msra.mxu0 %v459
        %477 = vmatpush.msra.mxu0 %v458
        %478 = vmatpush.msra.mxu0 %v457
        %479 = vmatpush.msra.mxu0 %v456
        %480 = vmatpush.msra.mxu0 %v455
        %481 = vmatpush.msra.mxu0 %v454
        %482 = vmatpush.msra.mxu0 %v453
        %483 = vmatpush.msra.mxu0 %v452
        %484 = vmatpush.msra.mxu0 %v451
        %485 = vmatpush.msra.mxu0 %v450
        %486 = vmatmul.f32.gmra.mxu0 %v449
        %v487 = vpop.f32.mrf.mxu0
        %v488 = vadd.f32 %v468, %v487
        %489 = vdwg.mxu0
        %v490 = vmax.f32 %v488, 0.0
        %v491 = vld [vmem:[#allocation7] sm:$0xff]
        %v492 = vld [vmem:[#allocation7 + $0x8] sm:$0xff]
        %v493 = vld [vmem:[#allocation7 + $0x10] sm:$0xff]
        %v494 = vld [vmem:[#allocation7 + $0x18] sm:$0xff]
        %v495 = vld [vmem:[#allocation7 + $0x20] sm:$0xff]
        %v496 = vld [vmem:[#allocation7 + $0x28] sm:$0xff]
        %v497 = vld [vmem:[#allocation7 + $0x30] sm:$0xff]
        %v498 = vld [vmem:[#allocation7 + $0x38] sm:$0xff]
        %v499 = vld [vmem:[#allocation7 + $0x40] sm:$0xff]
        %v500 = vld [vmem:[#allocation7 + $0x48] sm:$0xff]
        %v501 = vld [vmem:[#allocation7 + $0x50] sm:$0xff]
        %v502 = vld [vmem:[#allocation7 + $0x58] sm:$0xff]
        %v503 = vld [vmem:[#allocation7 + $0x60] sm:$0xff]
        %v504 = vld [vmem:[#allocation7 + $0x68] sm:$0xff]
        %v505 = vld [vmem:[#allocation7 + $0x70] sm:$0xff]
        %v506 = vld [vmem:[#allocation7 + $0x78] sm:$0xff]
        %v507 = vld [vmem:[%s8] sm:$0x1]
        %v509 = vperm.slane %v507, 0
        %511 = vmatpush.msra.mxu0 %v506
        %512 = vmatpush.msra.mxu0 %v505
        %513 = vmatpush.msra.mxu0 %v504
        %514 = vmatpush.msra.mxu0 %v503
        %515 = vmatpush.msra.mxu0 %v502
        %516 = vmatpush.msra.mxu0 %v501
        %517 = vmatpush.msra.mxu0 %v500
        %518 = vmatpush.msra.mxu0 %v499
        %519 = vmatpush.msra.mxu0 %v498
        %520 = vmatpush.msra.mxu0 %v497
        %521 = vmatpush.msra.mxu0 %v496
        %522 = vmatpush.msra.mxu0 %v495
        %523 = vmatpush.msra.mxu0 %v494
        %524 = vmatpush.msra.mxu0 %v493
        %525 = vmatpush.msra.mxu0 %v492
        %526 = vmatpush.msra.mxu0 %v491
        %527 = vmatmul.f32.gmra.mxu0 %v490
        %v528 = vpop.f32.mrf.mxu0
        %v529 = vadd.f32 %v509, %v528
        %530 = vdwg.mxu0
        %531 = vst [vmem:[%s373] sm:$0xff] %v529
        %s532 = sand.u32 %s227, 1
        %s533 = scalar_lea.sflag [#allocation4], %s532
        %s534 = sand.u32 %s227, 1
        %s535 = smul.addr %s534, 8
        %s536 = scalar_lea.vmem [#allocation8], %s535
        // Predicated region
        $region69: #{tpu_custom_call.1} parent=55 // pred_check
          %p537 = pneg %p237
        $region70: #{tpu_custom_call.1} parent=55 // pred_check_branch
          %539 = sbr.rel (%p537) target = $region72
        $region71: #{tpu_custom_call.1} parent=55 // pred_region
          %541 = vsyncadd %s533, 0
          %s542 = smul.addr %s25, 8
          %s543 = scalar_lea.hbm %s9, %s542
          %s545 = sshll.u32 %s536, 4
          %s546 = int_to_ptr.vmem [resolvable:$true] %s545
          %s547 = sshll.u32 %s543, 4
          %s548 = int_to_ptr.hbm [resolvable:$true] %s547
          %550 = dma.vmem_to_hbm [thread:$0]  %s546, 128, %s548, %s533
        $region72: #{tpu_custom_call.1} parent=55 // pred_fallthru
          _
      $region56: #{tpu_custom_call.1} parent=5 // pred_fallthru
        _
      %p551 = scmp.le.s32.totalorder 2, %s20
      // Predicated region
      $region73: #{tpu_custom_call.1} parent=5 // pred_check
        %p552 = pneg %p551
      $region74: #{tpu_custom_call.1} parent=5 // pred_check_branch
        %554 = sbr.rel (%p552) target = $region76
      $region75: #{tpu_custom_call.1} parent=5 // pred_region
        %s555 = ssub.s32 %s20, 2
        // Predicated region
        $region77: #{tpu_custom_call.1} parent=75 // pred_check
          %p556 = pneg %p243
        $region78: #{tpu_custom_call.1} parent=75 // pred_check_branch
          %558 = sbr.rel (%p556) target = $region80
        $region79: #{tpu_custom_call.1} parent=75 // pred_region
          %s559 = sand.u32 %s228, 1
          %s560 = scalar_lea.sflag [#allocation4], %s559
          %s561 = sand.u32 %s228, 1
          %s562 = smul.addr %s561, 8
          %s563 = scalar_lea.vmem [#allocation8], %s562
          %565 = dma.done %s560, 128
        $region80: #{tpu_custom_call.1} parent=75 // pred_fallthru
          _
      $region76: #{tpu_custom_call.1} parent=5 // pred_fallthru
        _
    $region6: #{tpu_custom_call.1} parent=1 // loop_footer
      %s24 = sadd.s32 1, %s20
    $region7: #{tpu_custom_call.1} parent=1 // loop_footer_branch
      %19 = sbr.rel target = $region3
    $region8: #{tpu_custom_call.1} parent=1 // loop_exit
      _
    %566 = vsyncpa [#allocation3], 1
    %s567 = scalar_lea.sflag [#allocation3], 1
    %568 = vsyncpa %s567, 1
    %569 = vsyncpa [#allocation6], 1
    %570 = vsyncpa [#allocation4], 1
    %s571 = scalar_lea.sflag [#allocation4], 1
    %572 = vsyncpa %s571, 1

</llo_original>
